<compile_context>
chip_gen: v5e
topology: v5e:2x2
jax: 0.10.0
libtpu: 0.0.40
codegen_flags: <defaults>
</compile_context>

<pallas_src>
import functools

import jax
import jax.numpy as jnp
from jax import lax
from jax.experimental import pallas as pl
from jax.experimental.pallas import tpu as pltpu


def _round_up(x: int, m: int) -> int:
    return (x + m - 1) // m * m


# ---------------------------------------------------------------------------
# Kernel 1: per-(batch, axis) projection   y[b, r] = x[b, r] @ W[r] + bias[r]
# ---------------------------------------------------------------------------
def _proj_kernel(x_ref, w_ref, b_ref, o_ref):
    x = x_ref[...].astype(jnp.float32)                        # (tl, din)
    y = jnp.dot(x, w_ref[...].astype(jnp.float32),
                preferred_element_type=jnp.float32)           # (tl, dout)
    y = y + b_ref[...].astype(jnp.float32)                    # (1, dout) bcast
    o_ref[...] = y.astype(o_ref.dtype)


def _batched_projection(x, w, b, *, tile_l=512):
    """x: (B, R, L, din), w: (R, din, dout), b: (R, 1, dout) -> (B, R, L, dout)."""
    B, R, L, din = x.shape
    dout = w.shape[-1]
    tl = min(tile_l, _round_up(L, 8))
    l_pad = _round_up(L, tl)
    if l_pad != L:
        x = jnp.pad(x, ((0, 0), (0, 0), (0, l_pad - L), (0, 0)))

    out = pl.pallas_call(
        _proj_kernel,
        out_shape=jax.ShapeDtypeStruct((B, R, l_pad, dout), x.dtype),
        grid_spec=pltpu.PrefetchScalarGridSpec(
            num_scalar_prefetch=0,
            grid=(B, R, l_pad // tl),
            in_specs=[
                pl.BlockSpec((None, None, tl, din), lambda b_, r, l: (b_, r, l, 0)),
                pl.BlockSpec((None, din, dout), lambda b_, r, l: (r, 0, 0)),
                pl.BlockSpec((None, 1, dout), lambda b_, r, l: (r, 0, 0)),
            ],
            out_specs=pl.BlockSpec((None, None, tl, dout),
                                   lambda b_, r, l: (b_, r, l, 0)),
        ),
        compiler_params=pltpu.CompilerParams(
            dimension_semantics=("parallel", "parallel", "parallel")),
    )(x, w, b)
    return out[:, :, :L, :]


# ---------------------------------------------------------------------------
# Kernel 2: fused attention (+ gating + output projection + output bias)
#   One grid step handles all heads of one (batch, axis, q-tile).
# ---------------------------------------------------------------------------
def _attn_kernel(*refs, scale, gating):
    if gating:
        q_ref, k_ref, v_ref, g_ref, bias_ref, wo_ref, ob_ref, o_ref = refs
    else:
        q_ref, k_ref, v_ref, bias_ref, wo_ref, ob_ref, o_ref = refs
        g_ref = None

    q = q_ref[...].astype(jnp.float32) * scale                 # (H, tq, c)
    k = k_ref[...].astype(jnp.float32)                         # (H, Lk, c)
    v = v_ref[...].astype(jnp.float32)                         # (H, Lk, c)

    logits = jnp.einsum("hqc,hkc->hqk", q, k,
                        preferred_element_type=jnp.float32)    # (H, tq, Lk)
    logits = logits + bias_ref[...].astype(jnp.float32)

    m = jnp.max(logits, axis=-1, keepdims=True)                # stable softmax
    p = jnp.exp(logits - m)
    denom = jnp.sum(p, axis=-1, keepdims=True)
    attn = p * pl.reciprocal(denom, approx=True)               # EUP divide

    ctx = jnp.einsum("hqk,hkc->hqc", attn, v,
                     preferred_element_type=jnp.float32)       # (H, tq, c)
    if gating:
        gf = g_ref[...].astype(jnp.float32)
        gate = pl.reciprocal(1.0 + jnp.exp(-gf), approx=True)  # sigmoid on EUP
        ctx = ctx * gate

    out_h = jnp.einsum("hqc,hco->hqo", ctx,
                       wo_ref[...].astype(jnp.float32),
                       preferred_element_type=jnp.float32)     # (H, tq, out)
    out = jnp.sum(out_h, axis=0) + ob_ref[...].astype(jnp.float32)
    o_ref[...] = out.astype(o_ref.dtype)


def _fused_attention(q, k, v, g, bias, wo, ob, *, scale, gating,
                     tile_q=256, out_dtype=jnp.float32):
    """q/g: (B,R,H,Lq,c), k/v: (B,R,H,Lk,c), bias: (B,H,Lq,Lk),
    wo: (R,H,c,out), ob: (R,1,out) -> (B,R,Lq,out)."""
    B, R, H, Lq, c = q.shape
    Lk = k.shape[3]
    out_dim = wo.shape[-1]

    tq = min(tile_q, _round_up(Lq, 8))
    lq_pad = _round_up(Lq, tq)
    if lq_pad != Lq:
        pad5 = ((0, 0), (0, 0), (0, 0), (0, lq_pad - Lq), (0, 0))
        q = jnp.pad(q, pad5)
        if gating:
            g = jnp.pad(g, pad5)
        bias = jnp.pad(bias, ((0, 0), (0, 0), (0, lq_pad - Lq), (0, 0)))

    kernel = functools.partial(_attn_kernel, scale=scale, gating=gating)

    in_specs = [
        pl.BlockSpec((None, None, H, tq, c), lambda b_, r, qi: (b_, r, 0, qi, 0)),
        pl.BlockSpec((None, None, H, Lk, c), lambda b_, r, qi: (b_, r, 0, 0, 0)),
        pl.BlockSpec((None, None, H, Lk, c), lambda b_, r, qi: (b_, r, 0, 0, 0)),
    ]
    args = [q, k, v]
    if gating:
        in_specs.append(
            pl.BlockSpec((None, None, H, tq, c), lambda b_, r, qi: (b_, r, 0, qi, 0)))
        args.append(g)
    in_specs += [
        pl.BlockSpec((None, H, tq, Lk), lambda b_, r, qi: (b_, 0, qi, 0)),     # bias
        pl.BlockSpec((None, H, c, out_dim), lambda b_, r, qi: (r, 0, 0, 0)),   # o_w
        pl.BlockSpec((None, 1, out_dim), lambda b_, r, qi: (r, 0, 0)),         # o_b
    ]
    args += [bias, wo, ob]

    out = pl.pallas_call(
        kernel,
        out_shape=jax.ShapeDtypeStruct((B, R, lq_pad, out_dim), out_dtype),
        grid_spec=pltpu.PrefetchScalarGridSpec(
            num_scalar_prefetch=0,
            grid=(B, R, lq_pad // tq),
            in_specs=in_specs,
            out_specs=pl.BlockSpec((None, None, tq, out_dim),
                                   lambda b_, r, qi: (b_, r, qi, 0)),
        ),
        compiler_params=pltpu.CompilerParams(
            dimension_semantics=("parallel", "parallel", "parallel")),
    )(*args)
    return out[:, :, :Lq, :]


# ---------------------------------------------------------------------------
# Module forward (wrapper around the two Pallas kernels)
# ---------------------------------------------------------------------------
def attention_forward(q_inputs, kv_inputs, bias, params, *, n_head, c, n_axis,
                      gating, tile_q=256, tile_l=512):
    qg_w = params["qg_weights"]   # (q_dim, R, H, (1+g)*c)
    qg_b = params["qg_bias"]      # (R, H, 1, (1+g)*c)
    kv_w = params["kv_weights"]   # (kv_dim, R, H, 2c)
    kv_b = params["kv_bias"]      # (R, H, 1, 2c)
    o_w = params["o_weights"]     # (R, H, c, out_dim)
    o_b = params["o_bias"]        # (out_dim, R)

    q_dim, kv_dim = qg_w.shape[0], kv_w.shape[0]
    out_dim = o_w.shape[-1]
    R, H = n_axis, n_head
    cc = (1 + int(gating)) * c

    to_unsqueeze = (q_inputs.shape[-1] != n_axis) and (q_inputs.shape[-1] == q_dim)
    if to_unsqueeze:
        q_inputs = q_inputs[..., None]
        kv_inputs = kv_inputs[..., None]

    B, Lq = q_inputs.shape[0], q_inputs.shape[1]
    Lk = kv_inputs.shape[1]

    # bias has shape (*, n_head, q_len, kv_len); shared across the n_axis dim.
    # TODO(synk): per-axis (n_axis-resolved) bias variants are not plumbed through.
    bias4 = jnp.broadcast_to(bias, (B, H, Lq, Lk)).astype(jnp.float32)

    # (B, L, dim, R) -> (B, R, L, dim)
    xq = jnp.moveaxis(q_inputs, -1, 1)
    xkv = jnp.moveaxis(kv_inputs, -1, 1)

    # Fold (head, channel) into one lane-dense projection output dim.
    w_qg = jnp.transpose(qg_w, (1, 0, 2, 3)).reshape(R, q_dim, H * cc)
    b_qg = qg_b.reshape(R, 1, H * cc)
    w_kv = jnp.transpose(kv_w, (1, 0, 2, 3)).reshape(R, kv_dim, H * 2 * c)
    b_kv = kv_b.reshape(R, 1, H * 2 * c)

    qg = _batched_projection(xq, w_qg, b_qg, tile_l=tile_l)     # (B,R,Lq,H*cc)
    kv = _batched_projection(xkv, w_kv, b_kv, tile_l=tile_l)    # (B,R,Lk,H*2c)

    qg = qg.reshape(B, R, Lq, H, cc).transpose(0, 1, 3, 2, 4)   # (B,R,H,Lq,cc)
    kv = kv.reshape(B, R, Lk, H, 2 * c).transpose(0, 1, 3, 2, 4)

    q = qg[..., :c]
    g = qg[..., c:2 * c] if gating else None
    k = kv[..., :c]
    v = kv[..., c:2 * c]

    ob = jnp.transpose(o_b, (1, 0)).reshape(R, 1, out_dim)

    out = _fused_attention(q, k, v, g, bias4, o_w, ob,
                           scale=float(c) ** -0.5, gating=gating,
                           tile_q=tile_q, out_dtype=q_inputs.dtype)  # (B,R,Lq,out)

    out = jnp.transpose(out, (0, 2, 3, 1))                       # (B,Lq,out,R)
    if to_unsqueeze:
        out = out[..., 0]
    return out


# ---------------------------------------------------------------------------
# Pure-JAX reference (mirrors the PyTorch/tinygrad einsums)
# ---------------------------------------------------------------------------
def reference_attention(q_inputs, kv_inputs, bias, params, *, n_head, c, n_axis,
                        gating):
    hp = lax.Precision.HIGHEST
    qg_w, qg_b = params["qg_weights"], params["qg_bias"]
    kv_w, kv_b = params["kv_weights"], params["kv_bias"]
    o_w, o_b = params["o_weights"], params["o_bias"]
    q_dim = qg_w.shape[0]

    to_unsqueeze = (q_inputs.shape[-1] != n_axis) and (q_inputs.shape[-1] == q_dim)
    if to_unsqueeze:
        q_inputs = q_inputs[..., None]
        kv_inputs = kv_inputs[..., None]
    B, Lq = q_inputs.shape[0], q_inputs.shape[1]
    Lk = kv_inputs.shape[1]

    qg = jnp.einsum("bqar,arhc->brhqc", q_inputs, qg_w, precision=hp) + qg_b
    q = qg[..., :c]
    kv = jnp.einsum("bkar,arhc->brhkc", kv_inputs, kv_w, precision=hp) + kv_b
    k, v = kv[..., :c], kv[..., c:2 * c]

    scale = float(c) ** -0.5
    bias5 = jnp.broadcast_to(bias, (B, n_head, Lq, Lk))[:, None]   # (B,1,H,Lq,Lk)
    logits = jnp.einsum("brhid,brhjd->brhij", q * scale, k, precision=hp) + bias5
    attn = jax.nn.softmax(logits, axis=-1)
    out = jnp.einsum("brhij,brhjd->brhid", attn, v, precision=hp)
    if gating:
        out = out * jax.nn.sigmoid(qg[..., c:2 * c])
    output = jnp.einsum("brhqc,rhco->bqor", out, o_w, precision=hp) + o_b
    if to_unsqueeze:
        output = output[..., 0]
    return output


# ---------------------------------------------------------------------------
if __name__ == "__main__":
    def make_params(key, q_dim, kv_dim, n_head, c, out_dim, n_axis, gating):
        ks = jax.random.split(key, 6)
        cc = (1 + int(gating)) * c
        return {
            "qg_weights": jax.random.normal(ks[0], (q_dim, n_axis, n_head, cc),
                                            jnp.float32) * 0.05,
            "qg_bias": jax.random.normal(ks[1], (n_axis, n_head, 1, cc),
                                         jnp.float32) * 0.01,
            "kv_weights": jax.random.normal(ks[2], (kv_dim, n_axis, n_head, 2 * c),
                                            jnp.float32) * 0.05,
            "kv_bias": jax.random.normal(ks[3], (n_axis, n_head, 1, 2 * c),
                                         jnp.float32) * 0.01,
            "o_weights": jax.random.normal(ks[4], (n_axis, n_head, c, out_dim),
                                           jnp.float32) * 0.05,
            "o_bias": jax.random.normal(ks[5], (out_dim, n_axis),
                                        jnp.float32) * 0.01,
        }

    root = jax.random.PRNGKey(0)

    # ---- case 1: 3-D inputs (n_axis=1, unsqueeze/squeeze path), gating on ----
    q_dim = kv_dim = 32
    n_head, c, out_dim, n_axis, gating = 4, 16, 32, 1, True
    B, Lq, Lk = 2, 8, 16
    k0, k1, k2, k3, k4 = jax.random.split(root, 5)
    params1 = make_params(k0, q_dim, kv_dim, n_head, c, out_dim, n_axis, gating)
    q_in = jax.random.normal(k1, (B, Lq, q_dim), jnp.float32)
    kv_in = jax.random.normal(k2, (B, Lk, kv_dim), jnp.float32)
    bias1 = jax.random.normal(k3, (B, n_head, Lq, Lk), jnp.float32) * 0.5

    fwd1 = jax.jit(functools.partial(attention_forward, n_head=n_head, c=c,
                                     n_axis=n_axis, gating=gating))
    y1 = jax.block_until_ready(fwd1(q_in, kv_in, bias1, params1))
    y1_ref = reference_attention(q_in, kv_in, bias1, params1, n_head=n_head, c=c,
                                 n_axis=n_axis, gating=gating)
    assert y1.shape == (B, Lq, out_dim) and y1.shape == y1_ref.shape
    assert jnp.allclose(y1, y1_ref, atol=2e-3, rtol=2e-3), "case 1 mismatch"

    # ---- case 2: 4-D inputs (n_axis=2), q_len not a multiple of 8 (padding) --
    q_dim2, kv_dim2 = 24, 40
    n_head2, c2, out_dim2, n_axis2, gating2 = 2, 32, 48, 2, True
    B2, Lq2, Lk2 = 1, 12, 8
    params2 = make_params(k4, q_dim2, kv_dim2, n_head2, c2, out_dim2, n_axis2,
                          gating2)
    k5, k6, k7 = jax.random.split(jax.random.PRNGKey(1), 3)
    q_in2 = jax.random.normal(k5, (B2, Lq2, q_dim2, n_axis2), jnp.float32)
    kv_in2 = jax.random.normal(k6, (B2, Lk2, kv_dim2, n_axis2), jnp.float32)
    bias2 = jax.random.normal(k7, (B2, n_head2, Lq2, Lk2), jnp.float32) * 0.5

    fwd2 = jax.jit(functools.partial(attention_forward, n_head=n_head2, c=c2,
                                     n_axis=n_axis2, gating=gating2))
    y2 = jax.block_until_ready(fwd2(q_in2, kv_in2, bias2, params2))
    y2_ref = reference_attention(q_in2, kv_in2, bias2, params2, n_head=n_head2,
                                 c=c2, n_axis=n_axis2, gating=gating2)
    assert y2.shape == (B2, Lq2, out_dim2, n_axis2) and y2.shape == y2_ref.shape
    assert jnp.allclose(y2, y2_ref, atol=2e-3, rtol=2e-3), "case 2 mismatch"

    # ---- case 3: 3-D inputs, gating OFF (un-gated branch coverage) -----------
    q_dim3 = kv_dim3 = 16
    n_head3, c3, out_dim3, n_axis3, gating3 = 2, 16, 16, 1, False
    B3, Lq3, Lk3 = 2, 8, 8
    k8, k9, k10, k11 = jax.random.split(jax.random.PRNGKey(2), 4)
    params3 = make_params(k8, q_dim3, kv_dim3, n_head3, c3, out_dim3, n_axis3,
                          gating3)
    q_in3 = jax.random.normal(k9, (B3, Lq3, q_dim3), jnp.float32)
    kv_in3 = jax.random.normal(k10, (B3, Lk3, kv_dim3), jnp.float32)
    bias3 = jax.random.normal(k11, (B3, n_head3, Lq3, Lk3), jnp.float32) * 0.5

    fwd3 = jax.jit(functools.partial(attention_forward, n_head=n_head3, c=c3,
                                     n_axis=n_axis3, gating=gating3))
    y3 = jax.block_until_ready(fwd3(q_in3, kv_in3, bias3, params3))
    y3_ref = reference_attention(q_in3, kv_in3, bias3, params3, n_head=n_head3,
                                 c=c3, n_axis=n_axis3, gating=gating3)
    assert y3.shape == (B3, Lq3, out_dim3) and y3.shape == y3_ref.shape
    assert jnp.allclose(y3, y3_ref, atol=2e-3, rtol=2e-3), "case 3 mismatch"

    print("KERNEL_OK")
</pallas_src>

<mosaic_0001>
module attributes {stable_mosaic.version = 11 : i64} {
  func.func @_proj_kernel(%arg0: i32, %arg1: i32, %arg2: i32, %arg3: memref<1x1x16x32xf32, #tpu.memory_space<vmem>>, %arg4: memref<1x32x128xf32, #tpu.memory_space<vmem>>, %arg5: memref<1x1x128xf32, #tpu.memory_space<vmem>>, %arg6: memref<1x1x16x128xf32, #tpu.memory_space<vmem>>) attributes {dimension_semantics = [#tpu.dimension_semantics<parallel>, #tpu.dimension_semantics<parallel>, #tpu.dimension_semantics<parallel>], iteration_bounds = array<i64: 2, 1, 1>, scalar_prefetch = 0 : i64, scratch_operands = 0 : i64, tpu.core_type = #tpu.core_type<tc>, window_params = [{transform_indices = @transform_0, window_bounds = array<i64: 1, 1, 16, 32>}, {transform_indices = @transform_1, window_bounds = array<i64: 1, 32, 128>}, {transform_indices = @transform_2, window_bounds = array<i64: 1, 1, 128>}, {transform_indices = @transform_3, window_bounds = array<i64: 1, 1, 16, 128>}]} {
    %c0 = arith.constant 0 : index
    %c0_0 = arith.constant 0 : index
    %c0_1 = arith.constant 0 : index
    %c0_2 = arith.constant 0 : index
    %0 = vector.load %arg3[%c0, %c0_0, %c0_1, %c0_2] : memref<1x1x16x32xf32, #tpu.memory_space<vmem>>, vector<1x1x16x32xf32>
    %1 = vector.shape_cast %0 : vector<1x1x16x32xf32> to vector<16x32xf32>
    %c0_3 = arith.constant 0 : index
    %c0_4 = arith.constant 0 : index
    %c0_5 = arith.constant 0 : index
    %2 = vector.load %arg4[%c0_3, %c0_4, %c0_5] : memref<1x32x128xf32, #tpu.memory_space<vmem>>, vector<1x32x128xf32>
    %3 = vector.shape_cast %2 : vector<1x32x128xf32> to vector<32x128xf32>
    %cst = arith.constant dense<0.000000e+00> : vector<16x128xf32>
    %4 = tpu.matmul %1, %3, %cst {dimension_numbers = #tpu.dot_dimension_numbers<[1], [0], [0], [1], [0, 0, 1, 1], [], []>} : vector<16x32xf32>, vector<32x128xf32>, vector<16x128xf32> -> vector<16x128xf32>
    %c0_6 = arith.constant 0 : index
    %c0_7 = arith.constant 0 : index
    %c0_8 = arith.constant 0 : index
    %5 = vector.load %arg5[%c0_6, %c0_7, %c0_8] : memref<1x1x128xf32, #tpu.memory_space<vmem>>, vector<1x1x128xf32>
    %6 = vector.shape_cast %5 : vector<1x1x128xf32> to vector<1x128xf32>
    %7 = vector.broadcast %6 : vector<1x128xf32> to vector<16x128xf32>
    %8 = arith.addf %4, %7 : vector<16x128xf32>
    %c0_9 = arith.constant 0 : index
    %c0_10 = arith.constant 0 : index
    %c0_11 = arith.constant 0 : index
    %c0_12 = arith.constant 0 : index
    %9 = vector.load %arg6[%c0_9, %c0_10, %c0_11, %c0_12] : memref<1x1x16x128xf32, #tpu.memory_space<vmem>>, vector<1x1x16x128xf32>
    %10 = vector.shape_cast %9 : vector<1x1x16x128xf32> to vector<16x128xf32>
    %11 = vector.shape_cast %8 : vector<16x128xf32> to vector<1x1x16x128xf32>
    tpu.vector_store %arg6[%c0_9, %c0_10, %c0_11, %c0_12], %11 {strides = array<i32>} : memref<1x1x16x128xf32, #tpu.memory_space<vmem>>, vector<1x1x16x128xf32>,
    return
  }
  func.func @transform_0(%arg0: i32, %arg1: i32, %arg2: i32) -> (i32, i32, i32, i32) {
    %c0_i32 = arith.constant 0 : i32
    %c0_i32_0 = arith.constant 0 : i32
    return %arg0, %arg1, %arg2, %c0_i32 : i32, i32, i32, i32
  }
  func.func @transform_1(%arg0: i32, %arg1: i32, %arg2: i32) -> (i32, i32, i32) {
    %c0_i32 = arith.constant 0 : i32
    %c0_i32_0 = arith.constant 0 : i32
    %c0_i32_1 = arith.constant 0 : i32
    return %arg1, %c0_i32, %c0_i32_0 : i32, i32, i32
  }
  func.func @transform_2(%arg0: i32, %arg1: i32, %arg2: i32) -> (i32, i32, i32) {
    %c0_i32 = arith.constant 0 : i32
    %c0_i32_0 = arith.constant 0 : i32
    %c0_i32_1 = arith.constant 0 : i32
    return %arg1, %c0_i32, %c0_i32_0 : i32, i32, i32
  }
  func.func @transform_3(%arg0: i32, %arg1: i32, %arg2: i32) -> (i32, i32, i32, i32) {
    %c0_i32 = arith.constant 0 : i32
    %c0_i32_0 = arith.constant 0 : i32
    return %arg0, %arg1, %arg2, %c0_i32 : i32, i32, i32, i32
  }
}

module attributes {stable_mosaic.version = 11 : i64} {
  func.func @_proj_kernel(%arg0: i32, %arg1: i32, %arg2: i32, %arg3: memref<1x1x8x32xf32, #tpu.memory_space<vmem>>, %arg4: memref<1x32x128xf32, #tpu.memory_space<vmem>>, %arg5: memref<1x1x128xf32, #tpu.memory_space<vmem>>, %arg6: memref<1x1x8x128xf32, #tpu.memory_space<vmem>>) attributes {dimension_semantics = [#tpu.dimension_semantics<parallel>, #tpu.dimension_semantics<parallel>, #tpu.dimension_semantics<parallel>], iteration_bounds = array<i64: 2, 1, 1>, scalar_prefetch = 0 : i64, scratch_operands = 0 : i64, tpu.core_type = #tpu.core_type<tc>, window_params = [{transform_indices = @transform_0, window_bounds = array<i64: 1, 1, 8, 32>}, {transform_indices = @transform_1, window_bounds = array<i64: 1, 32, 128>}, {transform_indices = @transform_2, window_bounds = array<i64: 1, 1, 128>}, {transform_indices = @transform_3, window_bounds = array<i64: 1, 1, 8, 128>}]} {
    %c0 = arith.constant 0 : index
    %c0_0 = arith.constant 0 : index
    %c0_1 = arith.constant 0 : index
    %c0_2 = arith.constant 0 : index
    %0 = vector.load %arg3[%c0, %c0_0, %c0_1, %c0_2] : memref<1x1x8x32xf32, #tpu.memory_space<vmem>>, vector<1x1x8x32xf32>
    %1 = vector.shape_cast %0 : vector<1x1x8x32xf32> to vector<8x32xf32>
    %c0_3 = arith.constant 0 : index
    %c0_4 = arith.constant 0 : index
    %c0_5 = arith.constant 0 : index
    %2 = vector.load %arg4[%c0_3, %c0_4, %c0_5] : memref<1x32x128xf32, #tpu.memory_space<vmem>>, vector<1x32x128xf32>
    %3 = vector.shape_cast %2 : vector<1x32x128xf32> to vector<32x128xf32>
    %cst = arith.constant dense<0.000000e+00> : vector<8x128xf32>
    %4 = tpu.matmul %1, %3, %cst {dimension_numbers = #tpu.dot_dimension_numbers<[1], [0], [0], [1], [0, 0, 1, 1], [], []>} : vector<8x32xf32>, vector<32x128xf32>, vector<8x128xf32> -> vector<8x128xf32>
    %c0_6 = arith.constant 0 : index
    %c0_7 = arith.constant 0 : index
    %c0_8 = arith.constant 0 : index
    %5 = vector.load %arg5[%c0_6, %c0_7, %c0_8] : memref<1x1x128xf32, #tpu.memory_space<vmem>>, vector<1x1x128xf32>
    %6 = vector.shape_cast %5 : vector<1x1x128xf32> to vector<1x128xf32>
    %7 = vector.broadcast %6 : vector<1x128xf32> to vector<8x128xf32>
    %8 = arith.addf %4, %7 : vector<8x128xf32>
    %c0_9 = arith.constant 0 : index
    %c0_10 = arith.constant 0 : index
    %c0_11 = arith.constant 0 : index
    %c0_12 = arith.constant 0 : index
    %9 = vector.load %arg6[%c0_9, %c0_10, %c0_11, %c0_12] : memref<1x1x8x128xf32, #tpu.memory_space<vmem>>, vector<1x1x8x128xf32>
    %10 = vector.shape_cast %9 : vector<1x1x8x128xf32> to vector<8x128xf32>
    %11 = vector.shape_cast %8 : vector<8x128xf32> to vector<1x1x8x128xf32>
    tpu.vector_store %arg6[%c0_9, %c0_10, %c0_11, %c0_12], %11 {strides = array<i32>} : memref<1x1x8x128xf32, #tpu.memory_space<vmem>>, vector<1x1x8x128xf32>,
    return
  }
  func.func @transform_0(%arg0: i32, %arg1: i32, %arg2: i32) -> (i32, i32, i32, i32) {
    %c0_i32 = arith.constant 0 : i32
    %c0_i32_0 = arith.constant 0 : i32
    return %arg0, %arg1, %arg2, %c0_i32 : i32, i32, i32, i32
  }
  func.func @transform_1(%arg0: i32, %arg1: i32, %arg2: i32) -> (i32, i32, i32) {
    %c0_i32 = arith.constant 0 : i32
    %c0_i32_0 = arith.constant 0 : i32
    %c0_i32_1 = arith.constant 0 : i32
    return %arg1, %c0_i32, %c0_i32_0 : i32, i32, i32
  }
  func.func @transform_2(%arg0: i32, %arg1: i32, %arg2: i32) -> (i32, i32, i32) {
    %c0_i32 = arith.constant 0 : i32
    %c0_i32_0 = arith.constant 0 : i32
    %c0_i32_1 = arith.constant 0 : i32
    return %arg1, %c0_i32, %c0_i32_0 : i32, i32, i32
  }
  func.func @transform_3(%arg0: i32, %arg1: i32, %arg2: i32) -> (i32, i32, i32, i32) {
    %c0_i32 = arith.constant 0 : i32
    %c0_i32_0 = arith.constant 0 : i32
    return %arg0, %arg1, %arg2, %c0_i32 : i32, i32, i32, i32
  }
}

module attributes {stable_mosaic.version = 11 : i64} {
  func.func @_attn_kernel(%arg0: i32, %arg1: i32, %arg2: i32, %arg3: memref<1x1x4x8x16xf32, #tpu.memory_space<vmem>>, %arg4: memref<1x1x4x16x16xf32, #tpu.memory_space<vmem>>, %arg5: memref<1x1x4x16x16xf32, #tpu.memory_space<vmem>>, %arg6: memref<1x1x4x8x16xf32, #tpu.memory_space<vmem>>, %arg7: memref<1x4x8x16xf32, #tpu.memory_space<vmem>>, %arg8: memref<1x4x16x32xf32, #tpu.memory_space<vmem>>, %arg9: memref<1x1x32xf32, #tpu.memory_space<vmem>>, %arg10: memref<1x1x8x32xf32, #tpu.memory_space<vmem>>) attributes {dimension_semantics = [#tpu.dimension_semantics<parallel>, #tpu.dimension_semantics<parallel>, #tpu.dimension_semantics<parallel>], iteration_bounds = array<i64: 2, 1, 1>, scalar_prefetch = 0 : i64, scratch_operands = 0 : i64, tpu.core_type = #tpu.core_type<tc>, window_params = [{transform_indices = @transform_0, window_bounds = array<i64: 1, 1, 4, 8, 16>}, {transform_indices = @transform_1, window_bounds = array<i64: 1, 1, 4, 16, 16>}, {transform_indices = @transform_2, window_bounds = array<i64: 1, 1, 4, 16, 16>}, {transform_indices = @transform_3, window_bounds = array<i64: 1, 1, 4, 8, 16>}, {transform_indices = @transform_4, window_bounds = array<i64: 1, 4, 8, 16>}, {transform_indices = @transform_5, window_bounds = array<i64: 1, 4, 16, 32>}, {transform_indices = @transform_6, window_bounds = array<i64: 1, 1, 32>}, {transform_indices = @transform_7, window_bounds = array<i64: 1, 1, 8, 32>}]} {
    %c0 = arith.constant 0 : index
    %c0_0 = arith.constant 0 : index
    %c0_1 = arith.constant 0 : index
    %c0_2 = arith.constant 0 : index
    %c0_3 = arith.constant 0 : index
    %0 = vector.load %arg3[%c0, %c0_0, %c0_1, %c0_2, %c0_3] : memref<1x1x4x8x16xf32, #tpu.memory_space<vmem>>, vector<1x1x4x8x16xf32>
    %1 = vector.shape_cast %0 : vector<1x1x4x8x16xf32> to vector<4x8x16xf32>
    %cst = arith.constant 2.500000e-01 : f32
    %2 = vector.broadcast %cst : f32 to vector<4x8x16xf32>
    %3 = arith.mulf %1, %2 : vector<4x8x16xf32>
    %c0_4 = arith.constant 0 : index
    %c0_5 = arith.constant 0 : index
    %c0_6 = arith.constant 0 : index
    %c0_7 = arith.constant 0 : index
    %c0_8 = arith.constant 0 : index
    %4 = vector.load %arg4[%c0_4, %c0_5, %c0_6, %c0_7, %c0_8] : memref<1x1x4x16x16xf32, #tpu.memory_space<vmem>>, vector<1x1x4x16x16xf32>
    %5 = vector.shape_cast %4 : vector<1x1x4x16x16xf32> to vector<4x16x16xf32>
    %c0_9 = arith.constant 0 : index
    %c0_10 = arith.constant 0 : index
    %c0_11 = arith.constant 0 : index
    %c0_12 = arith.constant 0 : index
    %c0_13 = arith.constant 0 : index
    %6 = vector.load %arg5[%c0_9, %c0_10, %c0_11, %c0_12, %c0_13] : memref<1x1x4x16x16xf32, #tpu.memory_space<vmem>>, vector<1x1x4x16x16xf32>
    %7 = vector.shape_cast %6 : vector<1x1x4x16x16xf32> to vector<4x16x16xf32>
    "tpu.trace_start"() <{level = 10 : i32, message = "hqc,hkc->hqk"}> : () -> ()
    %cst_14 = arith.constant dense<0.000000e+00> : vector<4x8x16xf32>
    %8 = tpu.matmul %3, %5, %cst_14 {dimension_numbers = #tpu.dot_dimension_numbers<[2], [2], [1], [1], [0, 0, 0, 1, 1, 1], [0], [0]>} : vector<4x8x16xf32>, vector<4x16x16xf32>, vector<4x8x16xf32> -> vector<4x8x16xf32>
    "tpu.trace_stop"() : () -> ()
    %c0_15 = arith.constant 0 : index
    %c0_16 = arith.constant 0 : index
    %c0_17 = arith.constant 0 : index
    %c0_18 = arith.constant 0 : index
    %9 = vector.load %arg7[%c0_15, %c0_16, %c0_17, %c0_18] : memref<1x4x8x16xf32, #tpu.memory_space<vmem>>, vector<1x4x8x16xf32>
    %10 = vector.shape_cast %9 : vector<1x4x8x16xf32> to vector<4x8x16xf32>
    %11 = arith.addf %8, %10 : vector<4x8x16xf32>
    %cst_19 = arith.constant dense<0xFF800000> : vector<4x8xf32>
    %12 = vector.multi_reduction <maximumf>, %11, %cst_19 [2] : vector<4x8x16xf32> to vector<4x8xf32>
    %13 = vector.shape_cast %12 : vector<4x8xf32> to vector<4x8x1xf32>
    %14 = vector.broadcast %13 : vector<4x8x1xf32> to vector<4x8x16xf32>
    %15 = arith.subf %11, %14 : vector<4x8x16xf32>
    %16 = math.exp %15 : vector<4x8x16xf32>
    %cst_20 = arith.constant dense<0.000000e+00> : vector<4x8xf32>
    %17 = vector.multi_reduction <add>, %16, %cst_20 [2] : vector<4x8x16xf32> to vector<4x8xf32>
    %18 = vector.shape_cast %17 : vector<4x8xf32> to vector<4x8x1xf32>
    %19 = tpu.reciprocal %18 {approx = true} : vector<4x8x1xf32> -> vector<4x8x1xf32>
    %20 = vector.broadcast %19 : vector<4x8x1xf32> to vector<4x8x16xf32>
    %21 = arith.mulf %16, %20 : vector<4x8x16xf32>
    "tpu.trace_start"() <{level = 10 : i32, message = "hqk,hkc->hqc"}> : () -> ()
    %cst_21 = arith.constant dense<0.000000e+00> : vector<4x8x16xf32>
    %22 = tpu.matmul %21, %7, %cst_21 {dimension_numbers = #tpu.dot_dimension_numbers<[2], [1], [1], [2], [0, 0, 0, 1, 1, 2], [0], [0]>} : vector<4x8x16xf32>, vector<4x16x16xf32>, vector<4x8x16xf32> -> vector<4x8x16xf32>
    "tpu.trace_stop"() : () -> ()
    %c0_22 = arith.constant 0 : index
    %c0_23 = arith.constant 0 : index
    %c0_24 = arith.constant 0 : index
    %c0_25 = arith.constant 0 : index
    %c0_26 = arith.constant 0 : index
    %23 = vector.load %arg6[%c0_22, %c0_23, %c0_24, %c0_25, %c0_26] : memref<1x1x4x8x16xf32, #tpu.memory_space<vmem>>, vector<1x1x4x8x16xf32>
    %24 = vector.shape_cast %23 : vector<1x1x4x8x16xf32> to vector<4x8x16xf32>
    %cst_27 = arith.constant 0.000000e+00 : f32
    %25 = vector.broadcast %cst_27 : f32 to vector<4x8x16xf32>
    %26 = arith.subf %25, %24 : vector<4x8x16xf32>
    %27 = math.exp %26 : vector<4x8x16xf32>
    %cst_28 = arith.constant 1.000000e+00 : f32
    %28 = vector.broadcast %cst_28 : f32 to vector<4x8x16xf32>
    %29 = arith.addf %28, %27 : vector<4x8x16xf32>
    %30 = tpu.reciprocal %29 {approx = true} : vector<4x8x16xf32> -> vector<4x8x16xf32>
    %31 = arith.mulf %22, %30 : vector<4x8x16xf32>
    %c0_29 = arith.constant 0 : index
    %c0_30 = arith.constant 0 : index
    %c0_31 = arith.constant 0 : index
    %c0_32 = arith.constant 0 : index
    %32 = vector.load %arg8[%c0_29, %c0_30, %c0_31, %c0_32] : memref<1x4x16x32xf32, #tpu.memory_space<vmem>>, vector<1x4x16x32xf32>
    %33 = vector.shape_cast %32 : vector<1x4x16x32xf32> to vector<4x16x32xf32>
    "tpu.trace_start"() <{level = 10 : i32, message = "hqc,hco->hqo"}> : () -> ()
    %cst_33 = arith.constant dense<0.000000e+00> : vector<4x8x32xf32>
    %34 = tpu.matmul %31, %33, %cst_33 {dimension_numbers = #tpu.dot_dimension_numbers<[2], [1], [1], [2], [0, 0, 0, 1, 1, 2], [0], [0]>} : vector<4x8x16xf32>, vector<4x16x32xf32>, vector<4x8x32xf32> -> vector<4x8x32xf32>
    "tpu.trace_stop"() : () -> ()
    %cst_34 = arith.constant dense<0.000000e+00> : vector<8x32xf32>
    %35 = vector.multi_reduction <add>, %34, %cst_34 [0] : vector<4x8x32xf32> to vector<8x32xf32>
    %c0_35 = arith.constant 0 : index
    %c0_36 = arith.constant 0 : index
    %c0_37 = arith.constant 0 : index
    %36 = vector.load %arg9[%c0_35, %c0_36, %c0_37] : memref<1x1x32xf32, #tpu.memory_space<vmem>>, vector<1x1x32xf32>
    %37 = vector.shape_cast %36 : vector<1x1x32xf32> to vector<1x32xf32>
    %38 = vector.broadcast %37 : vector<1x32xf32> to vector<8x32xf32>
    %39 = arith.addf %35, %38 : vector<8x32xf32>
    %c0_38 = arith.constant 0 : index
    %c0_39 = arith.constant 0 : index
    %c0_40 = arith.constant 0 : index
    %c0_41 = arith.constant 0 : index
    %40 = vector.load %arg10[%c0_38, %c0_39, %c0_40, %c0_41] : memref<1x1x8x32xf32, #tpu.memory_space<vmem>>, vector<1x1x8x32xf32>
    %41 = vector.shape_cast %40 : vector<1x1x8x32xf32> to vector<8x32xf32>
    %42 = vector.shape_cast %39 : vector<8x32xf32> to vector<1x1x8x32xf32>
    tpu.vector_store %arg10[%c0_38, %c0_39, %c0_40, %c0_41], %42 {strides = array<i32>} : memref<1x1x8x32xf32, #tpu.memory_space<vmem>>, vector<1x1x8x32xf32>,
    return
  }
  func.func @transform_0(%arg0: i32, %arg1: i32, %arg2: i32) -> (i32, i32, i32, i32, i32) {
    %c0_i32 = arith.constant 0 : i32
    %c0_i32_0 = arith.constant 0 : i32
    %c0_i32_1 = arith.constant 0 : i32
    return %arg0, %arg1, %c0_i32, %arg2, %c0_i32_0 : i32, i32, i32, i32, i32
  }
  func.func @transform_1(%arg0: i32, %arg1: i32, %arg2: i32) -> (i32, i32, i32, i32, i32) {
    %c0_i32 = arith.constant 0 : i32
    %c0_i32_0 = arith.constant 0 : i32
    %c0_i32_1 = arith.constant 0 : i32
    %c0_i32_2 = arith.constant 0 : i32
    return %arg0, %arg1, %c0_i32, %c0_i32_0, %c0_i32_1 : i32, i32, i32, i32, i32
  }
  func.func @transform_2(%arg0: i32, %arg1: i32, %arg2: i32) -> (i32, i32, i32, i32, i32) {
    %c0_i32 = arith.constant 0 : i32
    %c0_i32_0 = arith.constant 0 : i32
    %c0_i32_1 = arith.constant 0 : i32
    %c0_i32_2 = arith.constant 0 : i32
    return %arg0, %arg1, %c0_i32, %c0_i32_0, %c0_i32_1 : i32, i32, i32, i32, i32
  }
  func.func @transform_3(%arg0: i32, %arg1: i32, %arg2: i32) -> (i32, i32, i32, i32, i32) {
    %c0_i32 = arith.constant 0 : i32
    %c0_i32_0 = arith.constant 0 : i32
    %c0_i32_1 = arith.constant 0 : i32
    return %arg0, %arg1, %c0_i32, %arg2, %c0_i32_0 : i32, i32, i32, i32, i32
  }
  func.func @transform_4(%arg0: i32, %arg1: i32, %arg2: i32) -> (i32, i32, i32, i32) {
    %c0_i32 = arith.constant 0 : i32
    %c0_i32_0 = arith.constant 0 : i32
    %c0_i32_1 = arith.constant 0 : i32
    return %arg0, %c0_i32, %arg2, %c0_i32_0 : i32, i32, i32, i32
  }
  func.func @transform_5(%arg0: i32, %arg1: i32, %arg2: i32) -> (i32, i32, i32, i32) {
    %c0_i32 = arith.constant 0 : i32
    %c0_i32_0 = arith.constant 0 : i32
    %c0_i32_1 = arith.constant 0 : i32
    %c0_i32_2 = arith.constant 0 : i32
    return %arg1, %c0_i32, %c0_i32_0, %c0_i32_1 : i32, i32, i32, i32
  }
  func.func @transform_6(%arg0: i32, %arg1: i32, %arg2: i32) -> (i32, i32, i32) {
    %c0_i32 = arith.constant 0 : i32
    %c0_i32_0 = arith.constant 0 : i32
    %c0_i32_1 = arith.constant 0 : i32
    return %arg1, %c0_i32, %c0_i32_0 : i32, i32, i32
  }
  func.func @transform_7(%arg0: i32, %arg1: i32, %arg2: i32) -> (i32, i32, i32, i32) {
    %c0_i32 = arith.constant 0 : i32
    %c0_i32_0 = arith.constant 0 : i32
    return %arg0, %arg1, %arg2, %c0_i32 : i32, i32, i32, i32
  }
}

</mosaic_0001>

<llo_original>
// kernel: attention_forward.3
$region0: #{attention_forward.3}
  #allocation0 [shape = 'u32[]', space=smem, size = 0x4, offset = 0x4, fixed_abs, tag = 'smem constant byte address 0x4 - core index']
  #allocation1 [shape = 'u32[72,128]{1,0:T(1,128)}', space=vmem, size = 0x9000, scoped, tag = 'internal scratch']
  %s0 = inlined_call_operand.vmem [shape: f32[2,1,8,32], index: 0, kind: input, shape index: {}]
  %s1 = inlined_call_operand.vmem [shape: f32[1,32,128], index: 1, kind: input, shape index: {}]
  %s2 = inlined_call_operand.vmem [shape: f32[1,1,128], index: 2, kind: input, shape index: {}]
  %s3 = inlined_call_operand.vmem [shape: f32[2,1,8,128], index: 3, kind: output, shape index: {}]
  %s4 = sld [smem:[#allocation0]]
  $region45: #{attention_forward.3} parent=0
    _
  %s6 = ssub.s32 1, %s4
  %s7 = scalar_select 0, %s6, %s4
  loop: start=0, step=1, limit=4
  $region2: #{attention_forward.3} parent=0 // loop_pre_header
    _
  $region3: #{attention_forward.3} parent=0 // loop_header
    %s9 = sphi 0, %s13
    %p10 = scmp.ge.s32.totalorder %s9, 4
    %s16 = sphi 0, %s35
    %s17 = sphi 0, %s31
    %s18 = sphi 0, %s27
    %s19 = sphi 0, %s16
    %s20 = sphi 0, %s17
    %s21 = sphi 0, %s18
    %s22 = sphi 0, %s19
    %s23 = sphi 0, %s20
    %s24 = sphi 0, %s21
    %s42 = sphi 0, %s44
    %s45 = sphi 0, %s42
    %s46 = sphi 0, %s45
    %s62 = sphi 0, %s46
    %s68 = sphi 0, %s70
    %s71 = sphi 0, %s68
    %s72 = sphi 0, %s71
    %s88 = sphi 0, %s72
    %s94 = sphi 0, %s96
    %s97 = sphi 0, %s94
    %s98 = sphi 0, %s97
    %s114 = sphi 0, %s98
    %s124 = sphi 0, %s126
    %s127 = sphi 0, %s124
    %s128 = sphi 0, %s127
    %s144 = sphi 0, %s128
  $region4: #{attention_forward.3} parent=0 // loop_header_branch
    %12 = sbr.rel (%p10) target = $region8
  $region5: #{attention_forward.3} parent=0 // loop_body
    %s14 = ssub.s32 %s9, 1
    %s15 = ssub.s32 %s9, 2
    %s25 = sadd.s32 1, %s18
    %p26 = scmp.ge.s32.totalorder %s25, 1
    %s27 = scalar_select %p26, 0, %s25
    %s28 = sadd.s32 1, %s17
    %s29 = scalar_select %p26, %s28, %s17
    %p30 = scmp.ge.s32.totalorder %s29, 1
    %s31 = scalar_select %p30, 0, %s29
    %s32 = sadd.s32 1, %s16
    %s33 = scalar_select %p30, %s32, %s16
    %p34 = scmp.ge.s32.totalorder %s33, 2
    %s35 = scalar_select %p34, 0, %s33
    %s36 = ssub.s32 %s16, %s35
    %s37 = ssub.s32 %s17, %s31
    %s38 = sor.u32 %s36, %s37
    %s39 = ssub.s32 %s18, %s27
    %s40 = sor.u32 %s38, %s39
    %p41 = scmp.eq.s32.totalorder %s40, 0
    %s43 = sadd.s32 %s42, 1
    %s44 = scalar_select %p41, %s42, %s43
    %p47 = pneg %p41
    %p48 = scmp.eq.s32.totalorder %s9, 1
    %p49 = por %p47, %p48
    %p50 = scmp.ne.s32.totalorder %s42, %s45
    %p51 = scmp.eq.s32.totalorder %s9, 0
    %p52 = por %p50, %p51
    %p53 = scmp.ne.s32.totalorder %s42, %s45
    %p54 = scmp.eq.s32.totalorder %s14, 1
    %p55 = por %p53, %p54
    %p56 = scmp.ne.s32.totalorder %s45, %s46
    %p57 = scmp.eq.s32.totalorder %s14, 0
    %p58 = por %p56, %p57
    %p59 = scmp.ne.s32.totalorder %s45, %s46
    %p60 = scmp.eq.s32.totalorder %s15, 1
    %p61 = por %p59, %p60
    %p63 = scmp.ne.s32.totalorder %s46, %s62
    %p64 = scmp.eq.s32.totalorder %s15, 0
    %p65 = por %p63, %p64
    %s66 = ssub.s32 %s17, %s31
    %p67 = scmp.eq.s32.totalorder %s66, 0
    %s69 = sadd.s32 %s68, 1
    %s70 = scalar_select %p67, %s68, %s69
    %p73 = pneg %p67
    %p74 = scmp.eq.s32.totalorder %s9, 1
    %p75 = por %p73, %p74
    %p76 = scmp.ne.s32.totalorder %s68, %s71
    %p77 = scmp.eq.s32.totalorder %s9, 0
    %p78 = por %p76, %p77
    %p79 = scmp.ne.s32.totalorder %s68, %s71
    %p80 = scmp.eq.s32.totalorder %s14, 1
    %p81 = por %p79, %p80
    %p82 = scmp.ne.s32.totalorder %s71, %s72
    %p83 = scmp.eq.s32.totalorder %s14, 0
    %p84 = por %p82, %p83
    %p85 = scmp.ne.s32.totalorder %s71, %s72
    %p86 = scmp.eq.s32.totalorder %s15, 1
    %p87 = por %p85, %p86
    %p89 = scmp.ne.s32.totalorder %s72, %s88
    %p90 = scmp.eq.s32.totalorder %s15, 0
    %p91 = por %p89, %p90
    %s92 = ssub.s32 %s17, %s31
    %p93 = scmp.eq.s32.totalorder %s92, 0
    %s95 = sadd.s32 %s94, 1
    %s96 = scalar_select %p93, %s94, %s95
    %p99 = pneg %p93
    %p100 = scmp.eq.s32.totalorder %s9, 1
    %p101 = por %p99, %p100
    %p102 = scmp.ne.s32.totalorder %s94, %s97
    %p103 = scmp.eq.s32.totalorder %s9, 0
    %p104 = por %p102, %p103
    %p105 = scmp.ne.s32.totalorder %s94, %s97
    %p106 = scmp.eq.s32.totalorder %s14, 1
    %p107 = por %p105, %p106
    %p108 = scmp.ne.s32.totalorder %s97, %s98
    %p109 = scmp.eq.s32.totalorder %s14, 0
    %p110 = por %p108, %p109
    %p111 = scmp.ne.s32.totalorder %s97, %s98
    %p112 = scmp.eq.s32.totalorder %s15, 1
    %p113 = por %p111, %p112
    %p115 = scmp.ne.s32.totalorder %s98, %s114
    %p116 = scmp.eq.s32.totalorder %s15, 0
    %p117 = por %p115, %p116
    %s118 = ssub.s32 %s16, %s35
    %s119 = ssub.s32 %s17, %s31
    %s120 = sor.u32 %s118, %s119
    %s121 = ssub.s32 %s18, %s27
    %s122 = sor.u32 %s120, %s121
    %p123 = scmp.eq.s32.totalorder %s122, 0
    %s125 = sadd.s32 %s124, 1
    %s126 = scalar_select %p123, %s124, %s125
    %p129 = pneg %p123
    %p130 = scmp.eq.s32.totalorder %s9, 1
    %p131 = por %p129, %p130
    %p132 = scmp.ne.s32.totalorder %s124, %s127
    %p133 = scmp.eq.s32.totalorder %s9, 0
    %p134 = por %p132, %p133
    %p135 = scmp.ne.s32.totalorder %s124, %s127
    %p136 = scmp.eq.s32.totalorder %s14, 1
    %p137 = por %p135, %p136
    %p138 = scmp.ne.s32.totalorder %s127, %s128
    %p139 = scmp.eq.s32.totalorder %s14, 0
    %p140 = por %p138, %p139
    %p141 = scmp.ne.s32.totalorder %s127, %s128
    %p142 = scmp.eq.s32.totalorder %s15, 1
    %p143 = por %p141, %p142
    %p145 = scmp.ne.s32.totalorder %s128, %s144
    %p146 = scmp.eq.s32.totalorder %s15, 0
    %p147 = por %p145, %p146
    %p148 = scmp.le.s32.totalorder 1, %s9
    %p149 = scmp.lt.s32.totalorder %s9, 3
    %p150 = pnand %p148, %p149
    %p151 = pneg %p150
    // Predicated region
    $region9: #{attention_forward.3} parent=5 // pred_check
      _
    $region10: #{attention_forward.3} parent=5 // pred_check_branch
      %153 = sbr.rel (%p150) target = $region12
    $region11: #{attention_forward.3} parent=5 // pred_region
      %s154 = ssub.s32 %s9, 1
      // Predicated region
      $region13: #{attention_forward.3} parent=11 // pred_check
        %p155 = pneg %p84
      $region14: #{attention_forward.3} parent=11 // pred_check_branch
        %157 = sbr.rel (%p155) target = $region16
      $region15: #{attention_forward.3} parent=11 // pred_region
        %p158 = scmp.lt.s32.totalorder %s20, 0
        %s159 = scalar_select %p158, %s20, 0
        %s160 = smul.addr %s159, 4
        %s161 = smul.addr %s160, 8
        %s162 = scalar_lea.vmem %s1, %s161
      $region16: #{attention_forward.3} parent=11 // pred_fallthru
        _
      // Predicated region
      $region17: #{attention_forward.3} parent=11 // pred_check
        %p163 = pneg %p110
      $region18: #{attention_forward.3} parent=11 // pred_check_branch
        %165 = sbr.rel (%p163) target = $region20
      $region19: #{attention_forward.3} parent=11 // pred_region
        %p166 = scmp.lt.s32.totalorder %s20, 0
        %s167 = scalar_select %p166, %s20, 0
        %s168 = scalar_lea.vmem %s2, %s167
      $region20: #{attention_forward.3} parent=11 // pred_fallthru
        _
    $region12: #{attention_forward.3} parent=5 // pred_fallthru
      _
    %p169 = scmp.lt.s32.totalorder %s9, 2
    // Predicated region
    $region21: #{attention_forward.3} parent=5 // pred_check
      %p170 = pneg %p169
    $region22: #{attention_forward.3} parent=5 // pred_check_branch
      %172 = sbr.rel (%p170) target = $region24
    $region23: #{attention_forward.3} parent=5 // pred_region
      // Predicated region
      $region25: #{attention_forward.3} parent=23 // pred_check
        %p173 = pneg %p52
      $region26: #{attention_forward.3} parent=23 // pred_check_branch
        %175 = sbr.rel (%p173) target = $region28
      $region27: #{attention_forward.3} parent=23 // pred_region
        %p176 = scmp.lt.s32.totalorder %s16, 1
        %s177 = scalar_select %p176, %s16, 1
        %p178 = scmp.lt.s32.totalorder %s17, 0
        %s179 = scalar_select %p178, %s17, 0
        %p180 = scmp.lt.s32.totalorder %s18, 0
        %s181 = scalar_select %p180, %s18, 0
        %s182 = sadd.s32 %s181, %s179
        %s183 = sadd.s32 %s182, %s177
        %s184 = smul.addr %s183, 8
        %s185 = scalar_lea.vmem %s0, %s184
      $region28: #{attention_forward.3} parent=23 // pred_fallthru
        _
    $region24: #{attention_forward.3} parent=5 // pred_fallthru
      _
    %p186 = scmp.le.s32.totalorder 1, %s9
    %p187 = scmp.lt.s32.totalorder %s9, 3
    %p188 = pnand %p186, %p187
    %p189 = pneg %p188
    // Predicated region
    $region29: #{attention_forward.3} parent=5 // pred_check
      _
    $region30: #{attention_forward.3} parent=5 // pred_check_branch
      %191 = sbr.rel (%p188) target = $region32
    $region31: #{attention_forward.3} parent=5 // pred_region
      %s192 = ssub.s32 %s9, 1
      %p193 = scmp.lt.s32.totalorder %s19, 1
      %s194 = scalar_select %p193, %s19, 1
      %p195 = scmp.lt.s32.totalorder %s20, 0
      %s196 = scalar_select %p195, %s20, 0
      %p197 = scmp.lt.s32.totalorder %s21, 0
      %s198 = scalar_select %p197, %s21, 0
      %s199 = sadd.s32 %s198, %s196
      %s200 = sadd.s32 %s199, %s194
      %s201 = smul.addr %s200, 8
      %s202 = scalar_lea.vmem %s0, %s201
      %p203 = pneg %p58
      %p204 = pneg %p55
      %p205 = scmp.lt.s32.totalorder %s20, 0
      %s206 = scalar_select %p205, %s20, 0
      %s207 = smul.addr %s206, 4
      %s208 = smul.addr %s207, 8
      %s209 = scalar_lea.vmem %s1, %s208
      %p210 = pneg %p84
      %p211 = pneg %p81
      %p212 = scmp.lt.s32.totalorder %s20, 0
      %s213 = scalar_select %p212, %s20, 0
      %s214 = scalar_lea.vmem %s2, %s213
      %p215 = pneg %p110
      %p216 = pneg %p107
      %p217 = pneg %p140
      %p218 = pneg %p137
      %p219 = scmp.lt.s32.totalorder %s19, 1
      %s220 = scalar_select %p219, %s19, 1
      %p221 = scmp.lt.s32.totalorder %s20, 0
      %s222 = scalar_select %p221, %s20, 0
      %p223 = scmp.lt.s32.totalorder %s21, 0
      %s224 = scalar_select %p223, %s21, 0
      %s225 = sadd.s32 %s224, %s222
      %s226 = sadd.s32 %s225, %s220
      %s227 = smul.addr %s226, 8
      %s228 = scalar_lea.vmem %s3, %s227
      %p229 = scmp.lt.s32.totalorder %s19, 1
      %s230 = scalar_select %p229, %s19, 1
      %p231 = scmp.lt.s32.totalorder %s20, 0
      %s232 = scalar_select %p231, %s20, 0
      %p233 = scmp.lt.s32.totalorder %s21, 0
      %s234 = scalar_select %p233, %s21, 0
      %s235 = sadd.s32 %s234, %s232
      %s236 = sadd.s32 %s235, %s230
      %s237 = smul.addr %s236, 8
      %s238 = scalar_lea.vmem %s0, %s237
      %p239 = scmp.lt.s32.totalorder %s20, 0
      %s240 = scalar_select %p239, %s20, 0
      %s241 = smul.addr %s240, 4
      %s242 = smul.addr %s241, 8
      %s243 = scalar_lea.vmem %s1, %s242
      %p244 = scmp.lt.s32.totalorder %s20, 0
      %s245 = scalar_select %p244, %s20, 0
      %s246 = scalar_lea.vmem %s2, %s245
      %p247 = scmp.lt.s32.totalorder %s19, 1
      %s248 = scalar_select %p247, %s19, 1
      %p249 = scmp.lt.s32.totalorder %s20, 0
      %s250 = scalar_select %p249, %s20, 0
      %p251 = scmp.lt.s32.totalorder %s21, 0
      %s252 = scalar_select %p251, %s21, 0
      %s253 = sadd.s32 %s252, %s250
      %s254 = sadd.s32 %s253, %s248
      %s255 = smul.addr %s254, 8
      %s256 = scalar_lea.vmem %s3, %s255
      %v257 = vld [vmem:[%s238] sm:$0xff]
      %v258 = vld [vmem:[%s243] sm:$0xff]
      %v259 = vld [vmem:[%s243 + $0x8] sm:$0xff]
      %v260 = vld [vmem:[%s243 + $0x10] sm:$0xff]
      %v261 = vld [vmem:[%s243 + $0x18] sm:$0xff]
      %v262 = vld [vmem:[%s246] sm:$0x1]
      %v264 = vperm.slane %v262, 0
      %vm266 = vcmask 261120
      %v268 = vsel %vm266, %v257, 0
      %270 = vmatpush.msra.mxu0 0.0
      %271 = vmatpush.msra.mxu0 0.0
      %272 = vmatpush.msra.mxu0 0.0
      %273 = vmatpush.msra.mxu0 0.0
      %274 = vmatpush.msra.mxu0 0.0
      %275 = vmatpush.msra.mxu0 0.0
      %276 = vmatpush.msra.mxu0 0.0
      %277 = vmatpush.msra.mxu0 0.0
      %278 = vmatpush.msra.mxu0 0.0
      %279 = vmatpush.msra.mxu0 0.0
      %280 = vmatpush.msra.mxu0 0.0
      %281 = vmatpush.msra.mxu0 0.0
      %282 = vmatpush.msra.mxu0 %v261
      %283 = vmatpush.msra.mxu0 %v260
      %284 = vmatpush.msra.mxu0 %v259
      %285 = vmatpush.msra.mxu0 %v258
      %286 = vmatmul.f32.gmra.mxu0 %v268
      %v287 = vpop.f32.mrf.mxu0
      %v288 = vadd.f32 %v264, %v287
      %289 = vdwg.mxu0
      %290 = vst [vmem:[%s256] sm:$0xff] %v288
      %p291 = scmp.lt.s32.totalorder %s19, 1
      %s292 = scalar_select %p291, %s19, 1
      %p293 = scmp.lt.s32.totalorder %s20, 0
      %s294 = scalar_select %p293, %s20, 0
      %p295 = scmp.lt.s32.totalorder %s21, 0
      %s296 = scalar_select %p295, %s21, 0
      %s297 = sadd.s32 %s296, %s294
      %s298 = sadd.s32 %s297, %s292
      %s299 = smul.addr %s298, 8
      %s300 = scalar_lea.vmem %s3, %s299
      // Predicated region
      $region33: #{attention_forward.3} parent=31 // pred_check
        %p301 = pneg %p137
      $region34: #{attention_forward.3} parent=31 // pred_check_branch
        %303 = sbr.rel (%p301) target = $region36
      $region35: #{attention_forward.3} parent=31 // pred_region
        _
      $region36: #{attention_forward.3} parent=31 // pred_fallthru
        _
    $region32: #{attention_forward.3} parent=5 // pred_fallthru
      _
    %p304 = scmp.le.s32.totalorder 2, %s9
    // Predicated region
    $region37: #{attention_forward.3} parent=5 // pred_check
      %p305 = pneg %p304
    $region38: #{attention_forward.3} parent=5 // pred_check_branch
      %307 = sbr.rel (%p305) target = $region40
    $region39: #{attention_forward.3} parent=5 // pred_region
      %s308 = ssub.s32 %s9, 2
      // Predicated region
      $region41: #{attention_forward.3} parent=39 // pred_check
        %p309 = pneg %p143
      $region42: #{attention_forward.3} parent=39 // pred_check_branch
        %311 = sbr.rel (%p309) target = $region44
      $region43: #{attention_forward.3} parent=39 // pred_region
        %p312 = scmp.lt.s32.totalorder %s22, 1
        %s313 = scalar_select %p312, %s22, 1
        %p314 = scmp.lt.s32.totalorder %s23, 0
        %s315 = scalar_select %p314, %s23, 0
        %p316 = scmp.lt.s32.totalorder %s24, 0
        %s317 = scalar_select %p316, %s24, 0
        %s318 = sadd.s32 %s317, %s315
        %s319 = sadd.s32 %s318, %s313
        %s320 = smul.addr %s319, 8
        %s321 = scalar_lea.vmem %s3, %s320
      $region44: #{attention_forward.3} parent=39 // pred_fallthru
        _
    $region40: #{attention_forward.3} parent=5 // pred_fallthru
      _
  $region6: #{attention_forward.3} parent=0 // loop_footer
    %s13 = sadd.s32 1, %s9
  $region7: #{attention_forward.3} parent=0 // loop_footer_branch
    %8 = sbr.rel target = $region3
  $region8: #{attention_forward.3} parent=0 // loop_exit
    _

// kernel: attention_forward.4
$region0: #{attention_forward.4}
  #allocation0 [shape = 'u32[]', space=smem, size = 0x4, offset = 0x4, fixed_abs, tag = 'smem constant byte address 0x4 - core index']
  #allocation1 [shape = 'u32[72,128]{1,0:T(1,128)}', space=vmem, size = 0x9000, scoped, tag = 'internal scratch']
  %s0 = inlined_call_operand.vmem [shape: f32[2,1,16,32], index: 0, kind: input, shape index: {}]
  %s1 = inlined_call_operand.vmem [shape: f32[1,32,128], index: 1, kind: input, shape index: {}]
  %s2 = inlined_call_operand.vmem [shape: f32[1,1,128], index: 2, kind: input, shape index: {}]
  %s3 = inlined_call_operand.vmem [shape: f32[2,1,16,128], index: 3, kind: output, shape index: {}]
  %s4 = sld [smem:[#allocation0]]
  $region45: #{attention_forward.4} parent=0
    _
  %s6 = ssub.s32 1, %s4
  %s7 = scalar_select 0, %s6, %s4
  loop: start=0, step=1, limit=4
  $region2: #{attention_forward.4} parent=0 // loop_pre_header
    _
  $region3: #{attention_forward.4} parent=0 // loop_header
    %s9 = sphi 0, %s13
    %p10 = scmp.ge.s32.totalorder %s9, 4
    %s16 = sphi 0, %s35
    %s17 = sphi 0, %s31
    %s18 = sphi 0, %s27
    %s19 = sphi 0, %s16
    %s20 = sphi 0, %s17
    %s21 = sphi 0, %s18
    %s22 = sphi 0, %s19
    %s23 = sphi 0, %s20
    %s24 = sphi 0, %s21
    %s42 = sphi 0, %s44
    %s45 = sphi 0, %s42
    %s46 = sphi 0, %s45
    %s62 = sphi 0, %s46
    %s68 = sphi 0, %s70
    %s71 = sphi 0, %s68
    %s72 = sphi 0, %s71
    %s88 = sphi 0, %s72
    %s94 = sphi 0, %s96
    %s97 = sphi 0, %s94
    %s98 = sphi 0, %s97
    %s114 = sphi 0, %s98
    %s124 = sphi 0, %s126
    %s127 = sphi 0, %s124
    %s128 = sphi 0, %s127
    %s144 = sphi 0, %s128
  $region4: #{attention_forward.4} parent=0 // loop_header_branch
    %12 = sbr.rel (%p10) target = $region8
  $region5: #{attention_forward.4} parent=0 // loop_body
    %s14 = ssub.s32 %s9, 1
    %s15 = ssub.s32 %s9, 2
    %s25 = sadd.s32 1, %s18
    %p26 = scmp.ge.s32.totalorder %s25, 1
    %s27 = scalar_select %p26, 0, %s25
    %s28 = sadd.s32 1, %s17
    %s29 = scalar_select %p26, %s28, %s17
    %p30 = scmp.ge.s32.totalorder %s29, 1
    %s31 = scalar_select %p30, 0, %s29
    %s32 = sadd.s32 1, %s16
    %s33 = scalar_select %p30, %s32, %s16
    %p34 = scmp.ge.s32.totalorder %s33, 2
    %s35 = scalar_select %p34, 0, %s33
    %s36 = ssub.s32 %s16, %s35
    %s37 = ssub.s32 %s17, %s31
    %s38 = sor.u32 %s36, %s37
    %s39 = ssub.s32 %s18, %s27
    %s40 = sor.u32 %s38, %s39
    %p41 = scmp.eq.s32.totalorder %s40, 0
    %s43 = sadd.s32 %s42, 1
    %s44 = scalar_select %p41, %s42, %s43
    %p47 = pneg %p41
    %p48 = scmp.eq.s32.totalorder %s9, 1
    %p49 = por %p47, %p48
    %p50 = scmp.ne.s32.totalorder %s42, %s45
    %p51 = scmp.eq.s32.totalorder %s9, 0
    %p52 = por %p50, %p51
    %p53 = scmp.ne.s32.totalorder %s42, %s45
    %p54 = scmp.eq.s32.totalorder %s14, 1
    %p55 = por %p53, %p54
    %p56 = scmp.ne.s32.totalorder %s45, %s46
    %p57 = scmp.eq.s32.totalorder %s14, 0
    %p58 = por %p56, %p57
    %p59 = scmp.ne.s32.totalorder %s45, %s46
    %p60 = scmp.eq.s32.totalorder %s15, 1
    %p61 = por %p59, %p60
    %p63 = scmp.ne.s32.totalorder %s46, %s62
    %p64 = scmp.eq.s32.totalorder %s15, 0
    %p65 = por %p63, %p64
    %s66 = ssub.s32 %s17, %s31
    %p67 = scmp.eq.s32.totalorder %s66, 0
    %s69 = sadd.s32 %s68, 1
    %s70 = scalar_select %p67, %s68, %s69
    %p73 = pneg %p67
    %p74 = scmp.eq.s32.totalorder %s9, 1
    %p75 = por %p73, %p74
    %p76 = scmp.ne.s32.totalorder %s68, %s71
    %p77 = scmp.eq.s32.totalorder %s9, 0
    %p78 = por %p76, %p77
    %p79 = scmp.ne.s32.totalorder %s68, %s71
    %p80 = scmp.eq.s32.totalorder %s14, 1
    %p81 = por %p79, %p80
    %p82 = scmp.ne.s32.totalorder %s71, %s72
    %p83 = scmp.eq.s32.totalorder %s14, 0
    %p84 = por %p82, %p83
    %p85 = scmp.ne.s32.totalorder %s71, %s72
    %p86 = scmp.eq.s32.totalorder %s15, 1
    %p87 = por %p85, %p86
    %p89 = scmp.ne.s32.totalorder %s72, %s88
    %p90 = scmp.eq.s32.totalorder %s15, 0
    %p91 = por %p89, %p90
    %s92 = ssub.s32 %s17, %s31
    %p93 = scmp.eq.s32.totalorder %s92, 0
    %s95 = sadd.s32 %s94, 1
    %s96 = scalar_select %p93, %s94, %s95
    %p99 = pneg %p93
    %p100 = scmp.eq.s32.totalorder %s9, 1
    %p101 = por %p99, %p100
    %p102 = scmp.ne.s32.totalorder %s94, %s97
    %p103 = scmp.eq.s32.totalorder %s9, 0
    %p104 = por %p102, %p103
    %p105 = scmp.ne.s32.totalorder %s94, %s97
    %p106 = scmp.eq.s32.totalorder %s14, 1
    %p107 = por %p105, %p106
    %p108 = scmp.ne.s32.totalorder %s97, %s98
    %p109 = scmp.eq.s32.totalorder %s14, 0
    %p110 = por %p108, %p109
    %p111 = scmp.ne.s32.totalorder %s97, %s98
    %p112 = scmp.eq.s32.totalorder %s15, 1
    %p113 = por %p111, %p112
    %p115 = scmp.ne.s32.totalorder %s98, %s114
    %p116 = scmp.eq.s32.totalorder %s15, 0
    %p117 = por %p115, %p116
    %s118 = ssub.s32 %s16, %s35
    %s119 = ssub.s32 %s17, %s31
    %s120 = sor.u32 %s118, %s119
    %s121 = ssub.s32 %s18, %s27
    %s122 = sor.u32 %s120, %s121
    %p123 = scmp.eq.s32.totalorder %s122, 0
    %s125 = sadd.s32 %s124, 1
    %s126 = scalar_select %p123, %s124, %s125
    %p129 = pneg %p123
    %p130 = scmp.eq.s32.totalorder %s9, 1
    %p131 = por %p129, %p130
    %p132 = scmp.ne.s32.totalorder %s124, %s127
    %p133 = scmp.eq.s32.totalorder %s9, 0
    %p134 = por %p132, %p133
    %p135 = scmp.ne.s32.totalorder %s124, %s127
    %p136 = scmp.eq.s32.totalorder %s14, 1
    %p137 = por %p135, %p136
    %p138 = scmp.ne.s32.totalorder %s127, %s128
    %p139 = scmp.eq.s32.totalorder %s14, 0
    %p140 = por %p138, %p139
    %p141 = scmp.ne.s32.totalorder %s127, %s128
    %p142 = scmp.eq.s32.totalorder %s15, 1
    %p143 = por %p141, %p142
    %p145 = scmp.ne.s32.totalorder %s128, %s144
    %p146 = scmp.eq.s32.totalorder %s15, 0
    %p147 = por %p145, %p146
    %p148 = scmp.le.s32.totalorder 1, %s9
    %p149 = scmp.lt.s32.totalorder %s9, 3
    %p150 = pnand %p148, %p149
    %p151 = pneg %p150
    // Predicated region
    $region9: #{attention_forward.4} parent=5 // pred_check
      _
    $region10: #{attention_forward.4} parent=5 // pred_check_branch
      %153 = sbr.rel (%p150) target = $region12
    $region11: #{attention_forward.4} parent=5 // pred_region
      %s154 = ssub.s32 %s9, 1
      // Predicated region
      $region13: #{attention_forward.4} parent=11 // pred_check
        %p155 = pneg %p84
      $region14: #{attention_forward.4} parent=11 // pred_check_branch
        %157 = sbr.rel (%p155) target = $region16
      $region15: #{attention_forward.4} parent=11 // pred_region
        %p158 = scmp.lt.s32.totalorder %s20, 0
        %s159 = scalar_select %p158, %s20, 0
        %s160 = smul.addr %s159, 4
        %s161 = smul.addr %s160, 8
        %s162 = scalar_lea.vmem %s1, %s161
      $region16: #{attention_forward.4} parent=11 // pred_fallthru
        _
      // Predicated region
      $region17: #{attention_forward.4} parent=11 // pred_check
        %p163 = pneg %p110
      $region18: #{attention_forward.4} parent=11 // pred_check_branch
        %165 = sbr.rel (%p163) target = $region20
      $region19: #{attention_forward.4} parent=11 // pred_region
        %p166 = scmp.lt.s32.totalorder %s20, 0
        %s167 = scalar_select %p166, %s20, 0
        %s168 = scalar_lea.vmem %s2, %s167
      $region20: #{attention_forward.4} parent=11 // pred_fallthru
        _
    $region12: #{attention_forward.4} parent=5 // pred_fallthru
      _
    %p169 = scmp.lt.s32.totalorder %s9, 2
    // Predicated region
    $region21: #{attention_forward.4} parent=5 // pred_check
      %p170 = pneg %p169
    $region22: #{attention_forward.4} parent=5 // pred_check_branch
      %172 = sbr.rel (%p170) target = $region24
    $region23: #{attention_forward.4} parent=5 // pred_region
      // Predicated region
      $region25: #{attention_forward.4} parent=23 // pred_check
        %p173 = pneg %p52
      $region26: #{attention_forward.4} parent=23 // pred_check_branch
        %175 = sbr.rel (%p173) target = $region28
      $region27: #{attention_forward.4} parent=23 // pred_region
        %s176 = smul.u32 2, %s18
        %p177 = scmp.lt.s32.totalorder %s16, 1
        %s178 = scalar_select %p177, %s16, 1
        %p179 = scmp.lt.s32.totalorder %s17, 0
        %s180 = scalar_select %p179, %s17, 0
        %p181 = scmp.lt.s32.totalorder %s176, 1
        %s182 = scalar_select %p181, %s176, 1
        %s183 = smul.addr %s180, 2
        %s184 = sadd.s32 %s182, %s183
        %s185 = smul.addr %s178, 2
        %s186 = sadd.s32 %s184, %s185
        %s187 = smul.addr %s186, 8
        %s188 = scalar_lea.vmem %s0, %s187
        %s189 = smul.u32 2, %s18
      $region28: #{attention_forward.4} parent=23 // pred_fallthru
        _
    $region24: #{attention_forward.4} parent=5 // pred_fallthru
      _
    %p190 = scmp.le.s32.totalorder 1, %s9
    %p191 = scmp.lt.s32.totalorder %s9, 3
    %p192 = pnand %p190, %p191
    %p193 = pneg %p192
    // Predicated region
    $region29: #{attention_forward.4} parent=5 // pred_check
      _
    $region30: #{attention_forward.4} parent=5 // pred_check_branch
      %195 = sbr.rel (%p192) target = $region32
    $region31: #{attention_forward.4} parent=5 // pred_region
      %s196 = ssub.s32 %s9, 1
      %s197 = smul.u32 2, %s21
      %p198 = scmp.lt.s32.totalorder %s19, 1
      %s199 = scalar_select %p198, %s19, 1
      %p200 = scmp.lt.s32.totalorder %s20, 0
      %s201 = scalar_select %p200, %s20, 0
      %p202 = scmp.lt.s32.totalorder %s197, 1
      %s203 = scalar_select %p202, %s197, 1
      %s204 = smul.addr %s201, 2
      %s205 = sadd.s32 %s203, %s204
      %s206 = smul.addr %s199, 2
      %s207 = sadd.s32 %s205, %s206
      %s208 = smul.addr %s207, 8
      %s209 = scalar_lea.vmem %s0, %s208
      %p210 = pneg %p58
      %p211 = pneg %p55
      %p212 = scmp.lt.s32.totalorder %s20, 0
      %s213 = scalar_select %p212, %s20, 0
      %s214 = smul.addr %s213, 4
      %s215 = smul.addr %s214, 8
      %s216 = scalar_lea.vmem %s1, %s215
      %p217 = pneg %p84
      %p218 = pneg %p81
      %p219 = scmp.lt.s32.totalorder %s20, 0
      %s220 = scalar_select %p219, %s20, 0
      %s221 = scalar_lea.vmem %s2, %s220
      %p222 = pneg %p110
      %p223 = pneg %p107
      %p224 = pneg %p140
      %p225 = pneg %p137
      %s226 = smul.u32 2, %s21
      %p227 = scmp.lt.s32.totalorder %s19, 1
      %s228 = scalar_select %p227, %s19, 1
      %p229 = scmp.lt.s32.totalorder %s20, 0
      %s230 = scalar_select %p229, %s20, 0
      %p231 = scmp.lt.s32.totalorder %s226, 1
      %s232 = scalar_select %p231, %s226, 1
      %s233 = smul.addr %s230, 2
      %s234 = sadd.s32 %s232, %s233
      %s235 = smul.addr %s228, 2
      %s236 = sadd.s32 %s234, %s235
      %s237 = smul.addr %s236, 8
      %s238 = scalar_lea.vmem %s3, %s237
      %s239 = smul.u32 2, %s21
      %p240 = scmp.lt.s32.totalorder %s19, 1
      %s241 = scalar_select %p240, %s19, 1
      %p242 = scmp.lt.s32.totalorder %s20, 0
      %s243 = scalar_select %p242, %s20, 0
      %p244 = scmp.lt.s32.totalorder %s239, 1
      %s245 = scalar_select %p244, %s239, 1
      %s246 = smul.addr %s243, 2
      %s247 = sadd.s32 %s245, %s246
      %s248 = smul.addr %s241, 2
      %s249 = sadd.s32 %s247, %s248
      %s250 = smul.addr %s249, 8
      %s251 = scalar_lea.vmem %s0, %s250
      %s252 = smul.u32 2, %s21
      %p253 = scmp.lt.s32.totalorder %s20, 0
      %s254 = scalar_select %p253, %s20, 0
      %s255 = smul.addr %s254, 4
      %s256 = smul.addr %s255, 8
      %s257 = scalar_lea.vmem %s1, %s256
      %p258 = scmp.lt.s32.totalorder %s20, 0
      %s259 = scalar_select %p258, %s20, 0
      %s260 = scalar_lea.vmem %s2, %s259
      %s261 = smul.u32 2, %s21
      %p262 = scmp.lt.s32.totalorder %s19, 1
      %s263 = scalar_select %p262, %s19, 1
      %p264 = scmp.lt.s32.totalorder %s20, 0
      %s265 = scalar_select %p264, %s20, 0
      %p266 = scmp.lt.s32.totalorder %s261, 1
      %s267 = scalar_select %p266, %s261, 1
      %s268 = smul.addr %s265, 2
      %s269 = sadd.s32 %s267, %s268
      %s270 = smul.addr %s263, 2
      %s271 = sadd.s32 %s269, %s270
      %s272 = smul.addr %s271, 8
      %s273 = scalar_lea.vmem %s3, %s272
      %s274 = smul.u32 2, %s21
      %v275 = vld [vmem:[%s251] sm:$0xff]
      %v276 = vld [vmem:[%s251 + $0x8] sm:$0xff]
      %v277 = vld [vmem:[%s257] sm:$0xff]
      %v278 = vld [vmem:[%s257 + $0x8] sm:$0xff]
      %v279 = vld [vmem:[%s257 + $0x10] sm:$0xff]
      %v280 = vld [vmem:[%s257 + $0x18] sm:$0xff]
      %v281 = vld [vmem:[%s260] sm:$0x1]
      %v283 = vperm.slane %v281, 0
      %vm285 = vcmask 261120
      %v287 = vsel %vm285, %v275, 0
      %v290 = vsel %vm285, %v276, 0
      %292 = vmatpush.msra.mxu0 0.0
      %293 = vmatpush.msra.mxu0 0.0
      %294 = vmatpush.msra.mxu0 0.0
      %295 = vmatpush.msra.mxu0 0.0
      %296 = vmatpush.msra.mxu0 0.0
      %297 = vmatpush.msra.mxu0 0.0
      %298 = vmatpush.msra.mxu0 0.0
      %299 = vmatpush.msra.mxu0 0.0
      %300 = vmatpush.msra.mxu0 0.0
      %301 = vmatpush.msra.mxu0 0.0
      %302 = vmatpush.msra.mxu0 0.0
      %303 = vmatpush.msra.mxu0 0.0
      %304 = vmatpush.msra.mxu0 %v280
      %305 = vmatpush.msra.mxu0 %v279
      %306 = vmatpush.msra.mxu0 %v278
      %307 = vmatpush.msra.mxu0 %v277
      %308 = vmatmul.f32.gmra.mxu0 %v287
      %v309 = vpop.f32.mrf.mxu0
      %v310 = vadd.f32 %v283, %v309
      %311 = vmatmul.f32.gmra.mxu0 %v290
      %v312 = vpop.f32.mrf.mxu0
      %v313 = vadd.f32 %v283, %v312
      %314 = vdwg.mxu0
      %315 = vst [vmem:[%s273] sm:$0xff] %v310
      %316 = vst [vmem:[%s273 + $0x8] sm:$0xff] %v313
      %s317 = smul.u32 2, %s21
      %p318 = scmp.lt.s32.totalorder %s19, 1
      %s319 = scalar_select %p318, %s19, 1
      %p320 = scmp.lt.s32.totalorder %s20, 0
      %s321 = scalar_select %p320, %s20, 0
      %p322 = scmp.lt.s32.totalorder %s317, 1
      %s323 = scalar_select %p322, %s317, 1
      %s324 = smul.addr %s321, 2
      %s325 = sadd.s32 %s323, %s324
      %s326 = smul.addr %s319, 2
      %s327 = sadd.s32 %s325, %s326
      %s328 = smul.addr %s327, 8
      %s329 = scalar_lea.vmem %s3, %s328
      // Predicated region
      $region33: #{attention_forward.4} parent=31 // pred_check
        %p330 = pneg %p137
      $region34: #{attention_forward.4} parent=31 // pred_check_branch
        %332 = sbr.rel (%p330) target = $region36
      $region35: #{attention_forward.4} parent=31 // pred_region
        %s333 = smul.u32 2, %s21
      $region36: #{attention_forward.4} parent=31 // pred_fallthru
        _
    $region32: #{attention_forward.4} parent=5 // pred_fallthru
      _
    %p334 = scmp.le.s32.totalorder 2, %s9
    // Predicated region
    $region37: #{attention_forward.4} parent=5 // pred_check
      %p335 = pneg %p334
    $region38: #{attention_forward.4} parent=5 // pred_check_branch
      %337 = sbr.rel (%p335) target = $region40
    $region39: #{attention_forward.4} parent=5 // pred_region
      %s338 = ssub.s32 %s9, 2
      // Predicated region
      $region41: #{attention_forward.4} parent=39 // pred_check
        %p339 = pneg %p143
      $region42: #{attention_forward.4} parent=39 // pred_check_branch
        %341 = sbr.rel (%p339) target = $region44
      $region43: #{attention_forward.4} parent=39 // pred_region
        %s342 = smul.u32 2, %s24
        %p343 = scmp.lt.s32.totalorder %s22, 1
        %s344 = scalar_select %p343, %s22, 1
        %p345 = scmp.lt.s32.totalorder %s23, 0
        %s346 = scalar_select %p345, %s23, 0
        %p347 = scmp.lt.s32.totalorder %s342, 1
        %s348 = scalar_select %p347, %s342, 1
        %s349 = smul.addr %s346, 2
        %s350 = sadd.s32 %s348, %s349
        %s351 = smul.addr %s344, 2
        %s352 = sadd.s32 %s350, %s351
        %s353 = smul.addr %s352, 8
        %s354 = scalar_lea.vmem %s3, %s353
      $region44: #{attention_forward.4} parent=39 // pred_fallthru
        _
    $region40: #{attention_forward.4} parent=5 // pred_fallthru
      _
  $region6: #{attention_forward.4} parent=0 // loop_footer
    %s13 = sadd.s32 1, %s9
  $region7: #{attention_forward.4} parent=0 // loop_footer_branch
    %8 = sbr.rel target = $region3
  $region8: #{attention_forward.4} parent=0 // loop_exit
    _

// kernel: attention_forward.5
$region0: #{attention_forward.5}
  #allocation0 [shape = 'u32[]', space=smem, size = 0x4, offset = 0x4, fixed_abs, tag = 'smem constant byte address 0x4 - core index']
  #allocation1 [shape = 'u32[72,128]{1,0:T(1,128)}', space=vmem, size = 0x9000, scoped, tag = 'internal scratch']
  %s0 = inlined_call_operand.vmem [shape: f32[2,1,4,8,16], index: 0, kind: input, shape index: {}]
  %s1 = inlined_call_operand.vmem [shape: f32[2,1,4,16,16], index: 1, kind: input, shape index: {}]
  %s2 = inlined_call_operand.vmem [shape: f32[2,1,4,16,16], index: 2, kind: input, shape index: {}]
  %s3 = inlined_call_operand.vmem [shape: f32[2,1,4,8,16], index: 3, kind: input, shape index: {}]
  %s4 = inlined_call_operand.vmem [shape: f32[2,4,8,16], index: 4, kind: input, shape index: {}]
  %s5 = inlined_call_operand.vmem [shape: f32[1,4,16,32], index: 5, kind: input, shape index: {}]
  %s6 = inlined_call_operand.vmem [shape: f32[1,1,32], index: 6, kind: input, shape index: {}]
  %s7 = inlined_call_operand.hbm [shape: f32[2,1,8,32], index: 7, kind: output, shape index: {}]
  %s8 = sld [smem:[#allocation0]]
  $region61: #{attention_forward.5} parent=0
    _
  %s10 = ssub.s32 1, %s8
  %s11 = scalar_select 0, %s10, %s8
  $region1: #{attention_forward.5} parent=0
    #allocation2 [shape = 'u8[8192]{0}', space=vmem, size = 0x2000, scoped, tag = 'output window, operand 0']
    #allocation3 [shape = 's32[2]{0}', space=sflag, size = 0x8, scoped, tag = 'scoped memory for attention_forward.5']
    %12 = vsyncpa [#allocation3], 0
    %s13 = scalar_lea.sflag [#allocation3], 1
    %14 = vsyncpa %s13, 0
    loop: start=0, step=1, limit=4
    $region2: #{attention_forward.5} parent=1 // loop_pre_header
      _
    $region3: #{attention_forward.5} parent=1 // loop_header
      %s16 = sphi 0, %s20
      %p17 = scmp.ge.s32.totalorder %s16, 4
      %s23 = sphi 0, %s42
      %s24 = sphi 0, %s38
      %s25 = sphi 0, %s34
      %s26 = sphi 0, %s23
      %s27 = sphi 0, %s24
      %s28 = sphi 0, %s25
      %s29 = sphi 0, %s26
      %s30 = sphi 0, %s27
      %s31 = sphi 0, %s28
      %s49 = sphi 0, %s51
      %s52 = sphi 0, %s49
      %s53 = sphi 0, %s52
      %s69 = sphi 0, %s53
      %s77 = sphi 0, %s79
      %s80 = sphi 0, %s77
      %s81 = sphi 0, %s80
      %s97 = sphi 0, %s81
      %s105 = sphi 0, %s107
      %s108 = sphi 0, %s105
      %s109 = sphi 0, %s108
      %s125 = sphi 0, %s109
      %s135 = sphi 0, %s137
      %s138 = sphi 0, %s135
      %s139 = sphi 0, %s138
      %s155 = sphi 0, %s139
      %s163 = sphi 0, %s165
      %s166 = sphi 0, %s163
      %s167 = sphi 0, %s166
      %s183 = sphi 0, %s167
      %s189 = sphi 0, %s191
      %s192 = sphi 0, %s189
      %s193 = sphi 0, %s192
      %s209 = sphi 0, %s193
      %s215 = sphi 0, %s217
      %s218 = sphi 0, %s215
      %s219 = sphi 0, %s218
      %s235 = sphi 0, %s219
      %s245 = sphi 0, %s247
      %s248 = sphi 0, %s245
      %s249 = sphi 0, %s248
      %s265 = sphi 0, %s249
    $region4: #{attention_forward.5} parent=1 // loop_header_branch
      %19 = sbr.rel (%p17) target = $region8
    $region5: #{attention_forward.5} parent=1 // loop_body
      %s21 = ssub.s32 %s16, 1
      %s22 = ssub.s32 %s16, 2
      %s32 = sadd.s32 1, %s25
      %p33 = scmp.ge.s32.totalorder %s32, 1
      %s34 = scalar_select %p33, 0, %s32
      %s35 = sadd.s32 1, %s24
      %s36 = scalar_select %p33, %s35, %s24
      %p37 = scmp.ge.s32.totalorder %s36, 1
      %s38 = scalar_select %p37, 0, %s36
      %s39 = sadd.s32 1, %s23
      %s40 = scalar_select %p37, %s39, %s23
      %p41 = scmp.ge.s32.totalorder %s40, 2
      %s42 = scalar_select %p41, 0, %s40
      %s43 = ssub.s32 %s23, %s42
      %s44 = ssub.s32 %s24, %s38
      %s45 = sor.u32 %s43, %s44
      %s46 = ssub.s32 %s25, %s34
      %s47 = sor.u32 %s45, %s46
      %p48 = scmp.eq.s32.totalorder %s47, 0
      %s50 = sadd.s32 %s49, 1
      %s51 = scalar_select %p48, %s49, %s50
      %p54 = pneg %p48
      %p55 = scmp.eq.s32.totalorder %s16, 1
      %p56 = por %p54, %p55
      %p57 = scmp.ne.s32.totalorder %s49, %s52
      %p58 = scmp.eq.s32.totalorder %s16, 0
      %p59 = por %p57, %p58
      %p60 = scmp.ne.s32.totalorder %s49, %s52
      %p61 = scmp.eq.s32.totalorder %s21, 1
      %p62 = por %p60, %p61
      %p63 = scmp.ne.s32.totalorder %s52, %s53
      %p64 = scmp.eq.s32.totalorder %s21, 0
      %p65 = por %p63, %p64
      %p66 = scmp.ne.s32.totalorder %s52, %s53
      %p67 = scmp.eq.s32.totalorder %s22, 1
      %p68 = por %p66, %p67
      %p70 = scmp.ne.s32.totalorder %s53, %s69
      %p71 = scmp.eq.s32.totalorder %s22, 0
      %p72 = por %p70, %p71
      %s73 = ssub.s32 %s23, %s42
      %s74 = ssub.s32 %s24, %s38
      %s75 = sor.u32 %s73, %s74
      %p76 = scmp.eq.s32.totalorder %s75, 0
      %s78 = sadd.s32 %s77, 1
      %s79 = scalar_select %p76, %s77, %s78
      %p82 = pneg %p76
      %p83 = scmp.eq.s32.totalorder %s16, 1
      %p84 = por %p82, %p83
      %p85 = scmp.ne.s32.totalorder %s77, %s80
      %p86 = scmp.eq.s32.totalorder %s16, 0
      %p87 = por %p85, %p86
      %p88 = scmp.ne.s32.totalorder %s77, %s80
      %p89 = scmp.eq.s32.totalorder %s21, 1
      %p90 = por %p88, %p89
      %p91 = scmp.ne.s32.totalorder %s80, %s81
      %p92 = scmp.eq.s32.totalorder %s21, 0
      %p93 = por %p91, %p92
      %p94 = scmp.ne.s32.totalorder %s80, %s81
      %p95 = scmp.eq.s32.totalorder %s22, 1
      %p96 = por %p94, %p95
      %p98 = scmp.ne.s32.totalorder %s81, %s97
      %p99 = scmp.eq.s32.totalorder %s22, 0
      %p100 = por %p98, %p99
      %s101 = ssub.s32 %s23, %s42
      %s102 = ssub.s32 %s24, %s38
      %s103 = sor.u32 %s101, %s102
      %p104 = scmp.eq.s32.totalorder %s103, 0
      %s106 = sadd.s32 %s105, 1
      %s107 = scalar_select %p104, %s105, %s106
      %p110 = pneg %p104
      %p111 = scmp.eq.s32.totalorder %s16, 1
      %p112 = por %p110, %p111
      %p113 = scmp.ne.s32.totalorder %s105, %s108
      %p114 = scmp.eq.s32.totalorder %s16, 0
      %p115 = por %p113, %p114
      %p116 = scmp.ne.s32.totalorder %s105, %s108
      %p117 = scmp.eq.s32.totalorder %s21, 1
      %p118 = por %p116, %p117
      %p119 = scmp.ne.s32.totalorder %s108, %s109
      %p120 = scmp.eq.s32.totalorder %s21, 0
      %p121 = por %p119, %p120
      %p122 = scmp.ne.s32.totalorder %s108, %s109
      %p123 = scmp.eq.s32.totalorder %s22, 1
      %p124 = por %p122, %p123
      %p126 = scmp.ne.s32.totalorder %s109, %s125
      %p127 = scmp.eq.s32.totalorder %s22, 0
      %p128 = por %p126, %p127
      %s129 = ssub.s32 %s23, %s42
      %s130 = ssub.s32 %s24, %s38
      %s131 = sor.u32 %s129, %s130
      %s132 = ssub.s32 %s25, %s34
      %s133 = sor.u32 %s131, %s132
      %p134 = scmp.eq.s32.totalorder %s133, 0
      %s136 = sadd.s32 %s135, 1
      %s137 = scalar_select %p134, %s135, %s136
      %p140 = pneg %p134
      %p141 = scmp.eq.s32.totalorder %s16, 1
      %p142 = por %p140, %p141
      %p143 = scmp.ne.s32.totalorder %s135, %s138
      %p144 = scmp.eq.s32.totalorder %s16, 0
      %p145 = por %p143, %p144
      %p146 = scmp.ne.s32.totalorder %s135, %s138
      %p147 = scmp.eq.s32.totalorder %s21, 1
      %p148 = por %p146, %p147
      %p149 = scmp.ne.s32.totalorder %s138, %s139
      %p150 = scmp.eq.s32.totalorder %s21, 0
      %p151 = por %p149, %p150
      %p152 = scmp.ne.s32.totalorder %s138, %s139
      %p153 = scmp.eq.s32.totalorder %s22, 1
      %p154 = por %p152, %p153
      %p156 = scmp.ne.s32.totalorder %s139, %s155
      %p157 = scmp.eq.s32.totalorder %s22, 0
      %p158 = por %p156, %p157
      %s159 = ssub.s32 %s23, %s42
      %s160 = ssub.s32 %s25, %s34
      %s161 = sor.u32 %s159, %s160
      %p162 = scmp.eq.s32.totalorder %s161, 0
      %s164 = sadd.s32 %s163, 1
      %s165 = scalar_select %p162, %s163, %s164
      %p168 = pneg %p162
      %p169 = scmp.eq.s32.totalorder %s16, 1
      %p170 = por %p168, %p169
      %p171 = scmp.ne.s32.totalorder %s163, %s166
      %p172 = scmp.eq.s32.totalorder %s16, 0
      %p173 = por %p171, %p172
      %p174 = scmp.ne.s32.totalorder %s163, %s166
      %p175 = scmp.eq.s32.totalorder %s21, 1
      %p176 = por %p174, %p175
      %p177 = scmp.ne.s32.totalorder %s166, %s167
      %p178 = scmp.eq.s32.totalorder %s21, 0
      %p179 = por %p177, %p178
      %p180 = scmp.ne.s32.totalorder %s166, %s167
      %p181 = scmp.eq.s32.totalorder %s22, 1
      %p182 = por %p180, %p181
      %p184 = scmp.ne.s32.totalorder %s167, %s183
      %p185 = scmp.eq.s32.totalorder %s22, 0
      %p186 = por %p184, %p185
      %s187 = ssub.s32 %s24, %s38
      %p188 = scmp.eq.s32.totalorder %s187, 0
      %s190 = sadd.s32 %s189, 1
      %s191 = scalar_select %p188, %s189, %s190
      %p194 = pneg %p188
      %p195 = scmp.eq.s32.totalorder %s16, 1
      %p196 = por %p194, %p195
      %p197 = scmp.ne.s32.totalorder %s189, %s192
      %p198 = scmp.eq.s32.totalorder %s16, 0
      %p199 = por %p197, %p198
      %p200 = scmp.ne.s32.totalorder %s189, %s192
      %p201 = scmp.eq.s32.totalorder %s21, 1
      %p202 = por %p200, %p201
      %p203 = scmp.ne.s32.totalorder %s192, %s193
      %p204 = scmp.eq.s32.totalorder %s21, 0
      %p205 = por %p203, %p204
      %p206 = scmp.ne.s32.totalorder %s192, %s193
      %p207 = scmp.eq.s32.totalorder %s22, 1
      %p208 = por %p206, %p207
      %p210 = scmp.ne.s32.totalorder %s193, %s209
      %p211 = scmp.eq.s32.totalorder %s22, 0
      %p212 = por %p210, %p211
      %s213 = ssub.s32 %s24, %s38
      %p214 = scmp.eq.s32.totalorder %s213, 0
      %s216 = sadd.s32 %s215, 1
      %s217 = scalar_select %p214, %s215, %s216
      %p220 = pneg %p214
      %p221 = scmp.eq.s32.totalorder %s16, 1
      %p222 = por %p220, %p221
      %p223 = scmp.ne.s32.totalorder %s215, %s218
      %p224 = scmp.eq.s32.totalorder %s16, 0
      %p225 = por %p223, %p224
      %p226 = scmp.ne.s32.totalorder %s215, %s218
      %p227 = scmp.eq.s32.totalorder %s21, 1
      %p228 = por %p226, %p227
      %p229 = scmp.ne.s32.totalorder %s218, %s219
      %p230 = scmp.eq.s32.totalorder %s21, 0
      %p231 = por %p229, %p230
      %p232 = scmp.ne.s32.totalorder %s218, %s219
      %p233 = scmp.eq.s32.totalorder %s22, 1
      %p234 = por %p232, %p233
      %p236 = scmp.ne.s32.totalorder %s219, %s235
      %p237 = scmp.eq.s32.totalorder %s22, 0
      %p238 = por %p236, %p237
      %s239 = ssub.s32 %s23, %s42
      %s240 = ssub.s32 %s24, %s38
      %s241 = sor.u32 %s239, %s240
      %s242 = ssub.s32 %s25, %s34
      %s243 = sor.u32 %s241, %s242
      %p244 = scmp.eq.s32.totalorder %s243, 0
      %s246 = sadd.s32 %s245, 1
      %s247 = scalar_select %p244, %s245, %s246
      %p250 = pneg %p244
      %p251 = scmp.eq.s32.totalorder %s16, 1
      %p252 = por %p250, %p251
      %p253 = scmp.ne.s32.totalorder %s245, %s248
      %p254 = scmp.eq.s32.totalorder %s16, 0
      %p255 = por %p253, %p254
      %p256 = scmp.ne.s32.totalorder %s245, %s248
      %p257 = scmp.eq.s32.totalorder %s21, 1
      %p258 = por %p256, %p257
      %p259 = scmp.ne.s32.totalorder %s248, %s249
      %p260 = scmp.eq.s32.totalorder %s21, 0
      %p261 = por %p259, %p260
      %p262 = scmp.ne.s32.totalorder %s248, %s249
      %p263 = scmp.eq.s32.totalorder %s22, 1
      %p264 = por %p262, %p263
      %p266 = scmp.ne.s32.totalorder %s249, %s265
      %p267 = scmp.eq.s32.totalorder %s22, 0
      %p268 = por %p266, %p267
      %p269 = scmp.le.s32.totalorder 1, %s16
      %p270 = scmp.lt.s32.totalorder %s16, 3
      %p271 = pnand %p269, %p270
      %p272 = pneg %p271
      // Predicated region
      $region9: #{attention_forward.5} parent=5 // pred_check
        _
      $region10: #{attention_forward.5} parent=5 // pred_check_branch
        %274 = sbr.rel (%p271) target = $region12
      $region11: #{attention_forward.5} parent=5 // pred_region
        %s275 = ssub.s32 %s16, 1
        // Predicated region
        $region13: #{attention_forward.5} parent=11 // pred_check
          %p276 = pneg %p205
        $region14: #{attention_forward.5} parent=11 // pred_check_branch
          %278 = sbr.rel (%p276) target = $region16
        $region15: #{attention_forward.5} parent=11 // pred_region
          %p279 = scmp.lt.s32.totalorder %s27, 0
          %s280 = scalar_select %p279, %s27, 0
          %s281 = smul.addr %s280, 8
          %s282 = smul.addr %s281, 8
          %s283 = scalar_lea.vmem %s5, %s282
        $region16: #{attention_forward.5} parent=11 // pred_fallthru
          _
        // Predicated region
        $region17: #{attention_forward.5} parent=11 // pred_check
          %p284 = pneg %p231
        $region18: #{attention_forward.5} parent=11 // pred_check_branch
          %286 = sbr.rel (%p284) target = $region20
        $region19: #{attention_forward.5} parent=11 // pred_region
          %p287 = scmp.lt.s32.totalorder %s27, 0
          %s288 = scalar_select %p287, %s27, 0
          %s289 = scalar_lea.vmem %s6, %s288
        $region20: #{attention_forward.5} parent=11 // pred_fallthru
          _
      $region12: #{attention_forward.5} parent=5 // pred_fallthru
        _
      %p290 = scmp.lt.s32.totalorder %s16, 2
      // Predicated region
      $region21: #{attention_forward.5} parent=5 // pred_check
        %p291 = pneg %p290
      $region22: #{attention_forward.5} parent=5 // pred_check_branch
        %293 = sbr.rel (%p291) target = $region24
      $region23: #{attention_forward.5} parent=5 // pred_region
        // Predicated region
        $region25: #{attention_forward.5} parent=23 // pred_check
          %p294 = pneg %p59
        $region26: #{attention_forward.5} parent=23 // pred_check_branch
          %296 = sbr.rel (%p294) target = $region28
        $region27: #{attention_forward.5} parent=23 // pred_region
          %p297 = scmp.lt.s32.totalorder %s23, 1
          %s298 = scalar_select %p297, %s23, 1
          %p299 = scmp.lt.s32.totalorder %s24, 0
          %s300 = scalar_select %p299, %s24, 0
          %p301 = scmp.lt.s32.totalorder %s25, 0
          %s302 = scalar_select %p301, %s25, 0
          %s303 = smul.addr %s300, 4
          %s304 = sadd.s32 %s302, %s303
          %s305 = smul.addr %s298, 4
          %s306 = sadd.s32 %s304, %s305
          %s307 = smul.addr %s306, 8
          %s308 = scalar_lea.vmem %s0, %s307
        $region28: #{attention_forward.5} parent=23 // pred_fallthru
          _
        // Predicated region
        $region29: #{attention_forward.5} parent=23 // pred_check
          %p309 = pneg %p87
        $region30: #{attention_forward.5} parent=23 // pred_check_branch
          %311 = sbr.rel (%p309) target = $region32
        $region31: #{attention_forward.5} parent=23 // pred_region
          %p312 = scmp.lt.s32.totalorder %s23, 1
          %s313 = scalar_select %p312, %s23, 1
          %p314 = scmp.lt.s32.totalorder %s24, 0
          %s315 = scalar_select %p314, %s24, 0
          %s316 = smul.addr %s315, 8
          %s317 = smul.addr %s313, 8
          %s318 = sadd.s32 %s316, %s317
          %s319 = smul.addr %s318, 8
          %s320 = scalar_lea.vmem %s1, %s319
        $region32: #{attention_forward.5} parent=23 // pred_fallthru
          _
        // Predicated region
        $region33: #{attention_forward.5} parent=23 // pred_check
          %p321 = pneg %p115
        $region34: #{attention_forward.5} parent=23 // pred_check_branch
          %323 = sbr.rel (%p321) target = $region36
        $region35: #{attention_forward.5} parent=23 // pred_region
          %p324 = scmp.lt.s32.totalorder %s23, 1
          %s325 = scalar_select %p324, %s23, 1
          %p326 = scmp.lt.s32.totalorder %s24, 0
          %s327 = scalar_select %p326, %s24, 0
          %s328 = smul.addr %s327, 8
          %s329 = smul.addr %s325, 8
          %s330 = sadd.s32 %s328, %s329
          %s331 = smul.addr %s330, 8
          %s332 = scalar_lea.vmem %s2, %s331
        $region36: #{attention_forward.5} parent=23 // pred_fallthru
          _
        // Predicated region
        $region37: #{attention_forward.5} parent=23 // pred_check
          %p333 = pneg %p145
        $region38: #{attention_forward.5} parent=23 // pred_check_branch
          %335 = sbr.rel (%p333) target = $region40
        $region39: #{attention_forward.5} parent=23 // pred_region
          %p336 = scmp.lt.s32.totalorder %s23, 1
          %s337 = scalar_select %p336, %s23, 1
          %p338 = scmp.lt.s32.totalorder %s24, 0
          %s339 = scalar_select %p338, %s24, 0
          %p340 = scmp.lt.s32.totalorder %s25, 0
          %s341 = scalar_select %p340, %s25, 0
          %s342 = smul.addr %s339, 4
          %s343 = sadd.s32 %s341, %s342
          %s344 = smul.addr %s337, 4
          %s345 = sadd.s32 %s343, %s344
          %s346 = smul.addr %s345, 8
          %s347 = scalar_lea.vmem %s3, %s346
        $region40: #{attention_forward.5} parent=23 // pred_fallthru
          _
        // Predicated region
        $region41: #{attention_forward.5} parent=23 // pred_check
          %p348 = pneg %p173
        $region42: #{attention_forward.5} parent=23 // pred_check_branch
          %350 = sbr.rel (%p348) target = $region44
        $region43: #{attention_forward.5} parent=23 // pred_region
          %p351 = scmp.lt.s32.totalorder %s23, 1
          %s352 = scalar_select %p351, %s23, 1
          %p353 = scmp.lt.s32.totalorder %s25, 0
          %s354 = scalar_select %p353, %s25, 0
          %s355 = smul.addr %s352, 4
          %s356 = sadd.s32 %s354, %s355
          %s357 = smul.addr %s356, 8
          %s358 = scalar_lea.vmem %s4, %s357
        $region44: #{attention_forward.5} parent=23 // pred_fallthru
          _
      $region24: #{attention_forward.5} parent=5 // pred_fallthru
        _
      %p359 = scmp.le.s32.totalorder 1, %s16
      %p360 = scmp.lt.s32.totalorder %s16, 3
      %p361 = pnand %p359, %p360
      %p362 = pneg %p361
      // Predicated region
      $region45: #{attention_forward.5} parent=5 // pred_check
        _
      $region46: #{attention_forward.5} parent=5 // pred_check_branch
        %364 = sbr.rel (%p361) target = $region48
      $region47: #{attention_forward.5} parent=5 // pred_region
        %s365 = ssub.s32 %s16, 1
        %p366 = scmp.lt.s32.totalorder %s26, 1
        %s367 = scalar_select %p366, %s26, 1
        %p368 = scmp.lt.s32.totalorder %s27, 0
        %s369 = scalar_select %p368, %s27, 0
        %p370 = scmp.lt.s32.totalorder %s28, 0
        %s371 = scalar_select %p370, %s28, 0
        %s372 = smul.addr %s369, 4
        %s373 = sadd.s32 %s371, %s372
        %s374 = smul.addr %s367, 4
        %s375 = sadd.s32 %s373, %s374
        %s376 = smul.addr %s375, 8
        %s377 = scalar_lea.vmem %s0, %s376
        %p378 = pneg %p65
        %p379 = pneg %p62
        %p380 = scmp.lt.s32.totalorder %s26, 1
        %s381 = scalar_select %p380, %s26, 1
        %p382 = scmp.lt.s32.totalorder %s27, 0
        %s383 = scalar_select %p382, %s27, 0
        %s384 = smul.addr %s383, 8
        %s385 = smul.addr %s381, 8
        %s386 = sadd.s32 %s384, %s385
        %s387 = smul.addr %s386, 8
        %s388 = scalar_lea.vmem %s1, %s387
        %p389 = pneg %p93
        %p390 = pneg %p90
        %p391 = scmp.lt.s32.totalorder %s26, 1
        %s392 = scalar_select %p391, %s26, 1
        %p393 = scmp.lt.s32.totalorder %s27, 0
        %s394 = scalar_select %p393, %s27, 0
        %s395 = smul.addr %s394, 8
        %s396 = smul.addr %s392, 8
        %s397 = sadd.s32 %s395, %s396
        %s398 = smul.addr %s397, 8
        %s399 = scalar_lea.vmem %s2, %s398
        %p400 = pneg %p121
        %p401 = pneg %p118
        %p402 = scmp.lt.s32.totalorder %s26, 1
        %s403 = scalar_select %p402, %s26, 1
        %p404 = scmp.lt.s32.totalorder %s27, 0
        %s405 = scalar_select %p404, %s27, 0
        %p406 = scmp.lt.s32.totalorder %s28, 0
        %s407 = scalar_select %p406, %s28, 0
        %s408 = smul.addr %s405, 4
        %s409 = sadd.s32 %s407, %s408
        %s410 = smul.addr %s403, 4
        %s411 = sadd.s32 %s409, %s410
        %s412 = smul.addr %s411, 8
        %s413 = scalar_lea.vmem %s3, %s412
        %p414 = pneg %p151
        %p415 = pneg %p148
        %p416 = scmp.lt.s32.totalorder %s26, 1
        %s417 = scalar_select %p416, %s26, 1
        %p418 = scmp.lt.s32.totalorder %s28, 0
        %s419 = scalar_select %p418, %s28, 0
        %s420 = smul.addr %s417, 4
        %s421 = sadd.s32 %s419, %s420
        %s422 = smul.addr %s421, 8
        %s423 = scalar_lea.vmem %s4, %s422
        %p424 = pneg %p179
        %p425 = pneg %p176
        %p426 = scmp.lt.s32.totalorder %s27, 0
        %s427 = scalar_select %p426, %s27, 0
        %s428 = smul.addr %s427, 8
        %s429 = smul.addr %s428, 8
        %s430 = scalar_lea.vmem %s5, %s429
        %p431 = pneg %p205
        %p432 = pneg %p202
        %p433 = scmp.lt.s32.totalorder %s27, 0
        %s434 = scalar_select %p433, %s27, 0
        %s435 = scalar_lea.vmem %s6, %s434
        %p436 = pneg %p231
        %p437 = pneg %p228
        %p438 = pneg %p261
        %p439 = pneg %p258
        %s440 = sand.u32 %s248, 1
        %s441 = scalar_lea.sflag [#allocation3], %s440
        %s442 = sand.u32 %s248, 1
        %s443 = smul.addr %s442, 8
        %s444 = scalar_lea.vmem [#allocation2], %s443
        %p445 = scmp.lt.s32.totalorder %s26, 1
        %s446 = scalar_select %p445, %s26, 1
        %p447 = scmp.lt.s32.totalorder %s27, 0
        %s448 = scalar_select %p447, %s27, 0
        %p449 = scmp.lt.s32.totalorder %s28, 0
        %s450 = scalar_select %p449, %s28, 0
        %s451 = smul.addr %s448, 4
        %s452 = sadd.s32 %s450, %s451
        %s453 = smul.addr %s446, 4
        %s454 = sadd.s32 %s452, %s453
        %s455 = smul.addr %s454, 8
        %s456 = scalar_lea.vmem %s0, %s455
        %p457 = scmp.lt.s32.totalorder %s26, 1
        %s458 = scalar_select %p457, %s26, 1
        %p459 = scmp.lt.s32.totalorder %s27, 0
        %s460 = scalar_select %p459, %s27, 0
        %s461 = smul.addr %s460, 8
        %s462 = smul.addr %s458, 8
        %s463 = sadd.s32 %s461, %s462
        %s464 = smul.addr %s463, 8
        %s465 = scalar_lea.vmem %s1, %s464
        %p466 = scmp.lt.s32.totalorder %s26, 1
        %s467 = scalar_select %p466, %s26, 1
        %p468 = scmp.lt.s32.totalorder %s27, 0
        %s469 = scalar_select %p468, %s27, 0
        %s470 = smul.addr %s469, 8
        %s471 = smul.addr %s467, 8
        %s472 = sadd.s32 %s470, %s471
        %s473 = smul.addr %s472, 8
        %s474 = scalar_lea.vmem %s2, %s473
        %p475 = scmp.lt.s32.totalorder %s26, 1
        %s476 = scalar_select %p475, %s26, 1
        %p477 = scmp.lt.s32.totalorder %s27, 0
        %s478 = scalar_select %p477, %s27, 0
        %p479 = scmp.lt.s32.totalorder %s28, 0
        %s480 = scalar_select %p479, %s28, 0
        %s481 = smul.addr %s478, 4
        %s482 = sadd.s32 %s480, %s481
        %s483 = smul.addr %s476, 4
        %s484 = sadd.s32 %s482, %s483
        %s485 = smul.addr %s484, 8
        %s486 = scalar_lea.vmem %s3, %s485
        %p487 = scmp.lt.s32.totalorder %s26, 1
        %s488 = scalar_select %p487, %s26, 1
        %p489 = scmp.lt.s32.totalorder %s28, 0
        %s490 = scalar_select %p489, %s28, 0
        %s491 = smul.addr %s488, 4
        %s492 = sadd.s32 %s490, %s491
        %s493 = smul.addr %s492, 8
        %s494 = scalar_lea.vmem %s4, %s493
        %p495 = scmp.lt.s32.totalorder %s27, 0
        %s496 = scalar_select %p495, %s27, 0
        %s497 = smul.addr %s496, 8
        %s498 = smul.addr %s497, 8
        %s499 = scalar_lea.vmem %s5, %s498
        %p500 = scmp.lt.s32.totalorder %s27, 0
        %s501 = scalar_select %p500, %s27, 0
        %s502 = scalar_lea.vmem %s6, %s501
        %v503 = vld [vmem:[%s456] sm:$0xff]
        %v504 = vld [vmem:[%s456 + $0x8] sm:$0xff]
        %v505 = vld [vmem:[%s456 + $0x10] sm:$0xff]
        %v506 = vld [vmem:[%s456 + $0x18] sm:$0xff]
        %v507 = vmul.f32 %v503, 0.25
        %v508 = vmul.f32 %v504, 0.25
        %v509 = vmul.f32 %v505, 0.25
        %v510 = vmul.f32 %v506, 0.25
        %v511 = vld [vmem:[%s465] sm:$0xff]
        %v512 = vld [vmem:[%s465 + $0x8] sm:$0xff]
        %v513 = vld [vmem:[%s465 + $0x10] sm:$0xff]
        %v514 = vld [vmem:[%s465 + $0x18] sm:$0xff]
        %v515 = vld [vmem:[%s465 + $0x20] sm:$0xff]
        %v516 = vld [vmem:[%s465 + $0x28] sm:$0xff]
        %v517 = vld [vmem:[%s465 + $0x30] sm:$0xff]
        %v518 = vld [vmem:[%s465 + $0x38] sm:$0xff]
        %v519 = vld [vmem:[%s474] sm:$0xff]
        %v520 = vld [vmem:[%s474 + $0x8] sm:$0xff]
        %v521 = vld [vmem:[%s474 + $0x10] sm:$0xff]
        %v522 = vld [vmem:[%s474 + $0x18] sm:$0xff]
        %v523 = vld [vmem:[%s474 + $0x20] sm:$0xff]
        %v524 = vld [vmem:[%s474 + $0x28] sm:$0xff]
        %v525 = vld [vmem:[%s474 + $0x30] sm:$0xff]
        %v526 = vld [vmem:[%s474 + $0x38] sm:$0xff]
        %v527 = vld [vmem:[%s494] sm:$0xff]
        %v528 = vld [vmem:[%s494 + $0x8] sm:$0xff]
        %v529 = vld [vmem:[%s494 + $0x10] sm:$0xff]
        %v530 = vld [vmem:[%s494 + $0x18] sm:$0xff]
        %vm531 = vcmask 130048
        %v533 = vsel %vm531, %v507, 0
        %v536 = vsel %vm531, %v511, 0
        %v539 = vsel %vm531, %v512, 0
        %541 = vmatpush.xpose.msra.mxu0 0.0
        %542 = vmatpush.xpose.msra.mxu0 0.0
        %543 = vmatpush.xpose.msra.mxu0 0.0
        %544 = vmatpush.xpose.msra.mxu0 0.0
        %545 = vmatpush.xpose.msra.mxu0 0.0
        %546 = vmatpush.xpose.msra.mxu0 0.0
        %547 = vmatpush.xpose.msra.mxu0 0.0
        %548 = vmatpush.xpose.msra.mxu0 0.0
        %549 = vmatpush.xpose.msra.mxu0 0.0
        %550 = vmatpush.xpose.msra.mxu0 0.0
        %551 = vmatpush.xpose.msra.mxu0 0.0
        %552 = vmatpush.xpose.msra.mxu0 0.0
        %553 = vmatpush.xpose.msra.mxu0 0.0
        %554 = vmatpush.xpose.msra.mxu0 0.0
        %555 = vmatpush.xpose.msra.mxu0 %v539
        %556 = vmatpush.xpose.msra.mxu0 %v536
        %557 = vmatmul.f32.gmra.mxu0 %v533
        %v558 = vpop.f32.mrf.mxu0
        %v559 = vadd.f32 %v527, %v558
        %560 = vdwg.mxu0
        %v562 = vsel %vm531, %v508, 0
        %v565 = vsel %vm531, %v513, 0
        %v568 = vsel %vm531, %v514, 0
        %570 = vmatpush.xpose.msra.mxu0 0.0
        %571 = vmatpush.xpose.msra.mxu0 0.0
        %572 = vmatpush.xpose.msra.mxu0 0.0
        %573 = vmatpush.xpose.msra.mxu0 0.0
        %574 = vmatpush.xpose.msra.mxu0 0.0
        %575 = vmatpush.xpose.msra.mxu0 0.0
        %576 = vmatpush.xpose.msra.mxu0 0.0
        %577 = vmatpush.xpose.msra.mxu0 0.0
        %578 = vmatpush.xpose.msra.mxu0 0.0
        %579 = vmatpush.xpose.msra.mxu0 0.0
        %580 = vmatpush.xpose.msra.mxu0 0.0
        %581 = vmatpush.xpose.msra.mxu0 0.0
        %582 = vmatpush.xpose.msra.mxu0 0.0
        %583 = vmatpush.xpose.msra.mxu0 0.0
        %584 = vmatpush.xpose.msra.mxu0 %v568
        %585 = vmatpush.xpose.msra.mxu0 %v565
        %586 = vmatmul.f32.gmra.mxu0 %v562
        %v587 = vpop.f32.mrf.mxu0
        %v588 = vadd.f32 %v528, %v587
        %589 = vdwg.mxu0
        %v591 = vsel %vm531, %v509, 0
        %v594 = vsel %vm531, %v515, 0
        %v597 = vsel %vm531, %v516, 0
        %599 = vmatpush.xpose.msra.mxu0 0.0
        %600 = vmatpush.xpose.msra.mxu0 0.0
        %601 = vmatpush.xpose.msra.mxu0 0.0
        %602 = vmatpush.xpose.msra.mxu0 0.0
        %603 = vmatpush.xpose.msra.mxu0 0.0
        %604 = vmatpush.xpose.msra.mxu0 0.0
        %605 = vmatpush.xpose.msra.mxu0 0.0
        %606 = vmatpush.xpose.msra.mxu0 0.0
        %607 = vmatpush.xpose.msra.mxu0 0.0
        %608 = vmatpush.xpose.msra.mxu0 0.0
        %609 = vmatpush.xpose.msra.mxu0 0.0
        %610 = vmatpush.xpose.msra.mxu0 0.0
        %611 = vmatpush.xpose.msra.mxu0 0.0
        %612 = vmatpush.xpose.msra.mxu0 0.0
        %613 = vmatpush.xpose.msra.mxu0 %v597
        %614 = vmatpush.xpose.msra.mxu0 %v594
        %615 = vmatmul.f32.gmra.mxu0 %v591
        %v616 = vpop.f32.mrf.mxu0
        %v617 = vadd.f32 %v529, %v616
        %618 = vdwg.mxu0
        %v620 = vsel %vm531, %v510, 0
        %v623 = vsel %vm531, %v517, 0
        %v626 = vsel %vm531, %v518, 0
        %628 = vmatpush.xpose.msra.mxu0 0.0
        %629 = vmatpush.xpose.msra.mxu0 0.0
        %630 = vmatpush.xpose.msra.mxu0 0.0
        %631 = vmatpush.xpose.msra.mxu0 0.0
        %632 = vmatpush.xpose.msra.mxu0 0.0
        %633 = vmatpush.xpose.msra.mxu0 0.0
        %634 = vmatpush.xpose.msra.mxu0 0.0
        %635 = vmatpush.xpose.msra.mxu0 0.0
        %636 = vmatpush.xpose.msra.mxu0 0.0
        %637 = vmatpush.xpose.msra.mxu0 0.0
        %638 = vmatpush.xpose.msra.mxu0 0.0
        %639 = vmatpush.xpose.msra.mxu0 0.0
        %640 = vmatpush.xpose.msra.mxu0 0.0
        %641 = vmatpush.xpose.msra.mxu0 0.0
        %642 = vmatpush.xpose.msra.mxu0 %v626
        %643 = vmatpush.xpose.msra.mxu0 %v623
        %644 = vmatmul.f32.gmra.mxu0 %v620
        %v645 = vpop.f32.mrf.mxu0
        %v646 = vadd.f32 %v530, %v645
        %647 = vdwg.mxu0
        %v648 = vsel %vm531, %v559, -inf
        %649 = vmax.xlane.f32.xlu0 %v648
        %v650 = vpop.xlane.xlu0 %649
        %v651 = vsel %vm531, %v588, -inf
        %652 = vmax.xlane.f32.xlu0 %v651
        %v653 = vpop.xlane.xlu0 %652
        %v654 = vsel %vm531, %v617, -inf
        %655 = vmax.xlane.f32.xlu0 %v654
        %v656 = vpop.xlane.xlu0 %655
        %v657 = vsel %vm531, %v646, -inf
        %658 = vmax.xlane.f32.xlu0 %v657
        %v659 = vpop.xlane.xlu0 %658
        %v660 = vsub.f32 %v559, %v650
        %v661 = vsub.f32 %v588, %v653
        %v662 = vsub.f32 %v617, %v656
        %v663 = vsub.f32 %v646, %v659
        %v664 = vmul.f32 %v660, 1.442695
        %v665 = vpow.pop %v664
        %v666 = vmul.f32 %v661, 1.442695
        %v667 = vpow.pop %v666
        %v668 = vmul.f32 %v662, 1.442695
        %v669 = vpow.pop %v668
        %v670 = vmul.f32 %v663, 1.442695
        %v671 = vpow.pop %v670
        %v672 = vsel %vm531, %v665, 0.0
        %673 = vadd.xlane.f32.xlu0 %v672
        %v674 = vpop.xlane.xlu0 %673
        %v675 = vsel %vm531, %v667, 0.0
        %676 = vadd.xlane.f32.xlu0 %v675
        %v677 = vpop.xlane.xlu0 %676
        %v678 = vsel %vm531, %v669, 0.0
        %679 = vadd.xlane.f32.xlu0 %v678
        %v680 = vpop.xlane.xlu0 %679
        %v681 = vsel %vm531, %v671, 0.0
        %682 = vadd.xlane.f32.xlu0 %v681
        %v683 = vpop.xlane.xlu0 %682
        %v684 = vrcp.pop %v674
        %v685 = vrcp.pop %v677
        %v686 = vrcp.pop %v680
        %v687 = vrcp.pop %v683
        %v688 = vmul.f32 %v665, %v684
        %v689 = vmul.f32 %v667, %v685
        %v690 = vmul.f32 %v669, %v686
        %v691 = vmul.f32 %v671, %v687
        %v693 = vsel %vm531, %v688, 0
        %695 = vmatpush.msra.mxu0 0.0
        %696 = vmatpush.msra.mxu0 0.0
        %697 = vmatpush.msra.mxu0 0.0
        %698 = vmatpush.msra.mxu0 0.0
        %699 = vmatpush.msra.mxu0 0.0
        %700 = vmatpush.msra.mxu0 0.0
        %701 = vmatpush.msra.mxu0 0.0
        %702 = vmatpush.msra.mxu0 0.0
        %703 = vmatpush.msra.mxu0 0.0
        %704 = vmatpush.msra.mxu0 0.0
        %705 = vmatpush.msra.mxu0 0.0
        %706 = vmatpush.msra.mxu0 0.0
        %707 = vmatpush.msra.mxu0 0.0
        %708 = vmatpush.msra.mxu0 0.0
        %709 = vmatpush.msra.mxu0 %v520
        %710 = vmatpush.msra.mxu0 %v519
        %711 = vmatmul.f32.gmra.mxu0 %v693
        %v712 = vpop.f32.mrf.mxu0
        %v713 = vadd.f32 0.0, %v712
        %714 = vdwg.mxu0
        %v716 = vsel %vm531, %v689, 0
        %718 = vmatpush.msra.mxu0 0.0
        %719 = vmatpush.msra.mxu0 0.0
        %720 = vmatpush.msra.mxu0 0.0
        %721 = vmatpush.msra.mxu0 0.0
        %722 = vmatpush.msra.mxu0 0.0
        %723 = vmatpush.msra.mxu0 0.0
        %724 = vmatpush.msra.mxu0 0.0
        %725 = vmatpush.msra.mxu0 0.0
        %726 = vmatpush.msra.mxu0 0.0
        %727 = vmatpush.msra.mxu0 0.0
        %728 = vmatpush.msra.mxu0 0.0
        %729 = vmatpush.msra.mxu0 0.0
        %730 = vmatpush.msra.mxu0 0.0
        %731 = vmatpush.msra.mxu0 0.0
        %732 = vmatpush.msra.mxu0 %v522
        %733 = vmatpush.msra.mxu0 %v521
        %734 = vmatmul.f32.gmra.mxu0 %v716
        %v735 = vpop.f32.mrf.mxu0
        %v736 = vadd.f32 0.0, %v735
        %737 = vdwg.mxu0
        %v739 = vsel %vm531, %v690, 0
        %741 = vmatpush.msra.mxu0 0.0
        %742 = vmatpush.msra.mxu0 0.0
        %743 = vmatpush.msra.mxu0 0.0
        %744 = vmatpush.msra.mxu0 0.0
        %745 = vmatpush.msra.mxu0 0.0
        %746 = vmatpush.msra.mxu0 0.0
        %747 = vmatpush.msra.mxu0 0.0
        %748 = vmatpush.msra.mxu0 0.0
        %749 = vmatpush.msra.mxu0 0.0
        %750 = vmatpush.msra.mxu0 0.0
        %751 = vmatpush.msra.mxu0 0.0
        %752 = vmatpush.msra.mxu0 0.0
        %753 = vmatpush.msra.mxu0 0.0
        %754 = vmatpush.msra.mxu0 0.0
        %755 = vmatpush.msra.mxu0 %v524
        %756 = vmatpush.msra.mxu0 %v523
        %757 = vmatmul.f32.gmra.mxu0 %v739
        %v758 = vpop.f32.mrf.mxu0
        %v759 = vadd.f32 0.0, %v758
        %760 = vdwg.mxu0
        %v762 = vsel %vm531, %v691, 0
        %764 = vmatpush.msra.mxu0 0.0
        %765 = vmatpush.msra.mxu0 0.0
        %766 = vmatpush.msra.mxu0 0.0
        %767 = vmatpush.msra.mxu0 0.0
        %768 = vmatpush.msra.mxu0 0.0
        %769 = vmatpush.msra.mxu0 0.0
        %770 = vmatpush.msra.mxu0 0.0
        %771 = vmatpush.msra.mxu0 0.0
        %772 = vmatpush.msra.mxu0 0.0
        %773 = vmatpush.msra.mxu0 0.0
        %774 = vmatpush.msra.mxu0 0.0
        %775 = vmatpush.msra.mxu0 0.0
        %776 = vmatpush.msra.mxu0 0.0
        %777 = vmatpush.msra.mxu0 0.0
        %778 = vmatpush.msra.mxu0 %v526
        %779 = vmatpush.msra.mxu0 %v525
        %780 = vmatmul.f32.gmra.mxu0 %v762
        %v781 = vpop.f32.mrf.mxu0
        %v782 = vadd.f32 0.0, %v781
        %783 = vdwg.mxu0
        %v784 = vld [vmem:[%s486] sm:$0xff]
        %v785 = vld [vmem:[%s486 + $0x8] sm:$0xff]
        %v786 = vld [vmem:[%s486 + $0x10] sm:$0xff]
        %v787 = vld [vmem:[%s486 + $0x18] sm:$0xff]
        %v788 = vsub.f32 0.0, %v784
        %v789 = vsub.f32 0.0, %v785
        %v790 = vsub.f32 0.0, %v786
        %v791 = vsub.f32 0.0, %v787
        %v792 = vmul.f32 %v788, 1.442695
        %v793 = vpow.pop %v792
        %v794 = vmul.f32 %v789, 1.442695
        %v795 = vpow.pop %v794
        %v796 = vmul.f32 %v790, 1.442695
        %v797 = vpow.pop %v796
        %v798 = vmul.f32 %v791, 1.442695
        %v799 = vpow.pop %v798
        %v800 = vadd.f32 %v793, 1.0
        %v801 = vadd.f32 %v795, 1.0
        %v802 = vadd.f32 %v797, 1.0
        %v803 = vadd.f32 %v799, 1.0
        %v804 = vrcp.pop %v800
        %v805 = vrcp.pop %v801
        %v806 = vrcp.pop %v802
        %v807 = vrcp.pop %v803
        %v808 = vmul.f32 %v713, %v804
        %v809 = vmul.f32 %v736, %v805
        %v810 = vmul.f32 %v759, %v806
        %v811 = vmul.f32 %v782, %v807
        %v812 = vld [vmem:[%s499] sm:$0xff]
        %v813 = vld [vmem:[%s499 + $0x8] sm:$0xff]
        %v814 = vld [vmem:[%s499 + $0x10] sm:$0xff]
        %v815 = vld [vmem:[%s499 + $0x18] sm:$0xff]
        %v816 = vld [vmem:[%s499 + $0x20] sm:$0xff]
        %v817 = vld [vmem:[%s499 + $0x28] sm:$0xff]
        %v818 = vld [vmem:[%s499 + $0x30] sm:$0xff]
        %v819 = vld [vmem:[%s499 + $0x38] sm:$0xff]
        %v821 = vsel %vm531, %v808, 0
        %823 = vmatpush.msra.mxu0 0.0
        %824 = vmatpush.msra.mxu0 0.0
        %825 = vmatpush.msra.mxu0 0.0
        %826 = vmatpush.msra.mxu0 0.0
        %827 = vmatpush.msra.mxu0 0.0
        %828 = vmatpush.msra.mxu0 0.0
        %829 = vmatpush.msra.mxu0 0.0
        %830 = vmatpush.msra.mxu0 0.0
        %831 = vmatpush.msra.mxu0 0.0
        %832 = vmatpush.msra.mxu0 0.0
        %833 = vmatpush.msra.mxu0 0.0
        %834 = vmatpush.msra.mxu0 0.0
        %835 = vmatpush.msra.mxu0 0.0
        %836 = vmatpush.msra.mxu0 0.0
        %837 = vmatpush.msra.mxu0 %v813
        %838 = vmatpush.msra.mxu0 %v812
        %839 = vmatmul.f32.gmra.mxu0 %v821
        %v840 = vpop.f32.mrf.mxu0
        %v841 = vadd.f32 0.0, %v840
        %842 = vdwg.mxu0
        %v844 = vsel %vm531, %v809, 0
        %846 = vmatpush.msra.mxu0 0.0
        %847 = vmatpush.msra.mxu0 0.0
        %848 = vmatpush.msra.mxu0 0.0
        %849 = vmatpush.msra.mxu0 0.0
        %850 = vmatpush.msra.mxu0 0.0
        %851 = vmatpush.msra.mxu0 0.0
        %852 = vmatpush.msra.mxu0 0.0
        %853 = vmatpush.msra.mxu0 0.0
        %854 = vmatpush.msra.mxu0 0.0
        %855 = vmatpush.msra.mxu0 0.0
        %856 = vmatpush.msra.mxu0 0.0
        %857 = vmatpush.msra.mxu0 0.0
        %858 = vmatpush.msra.mxu0 0.0
        %859 = vmatpush.msra.mxu0 0.0
        %860 = vmatpush.msra.mxu0 %v815
        %861 = vmatpush.msra.mxu0 %v814
        %862 = vmatmul.f32.gmra.mxu0 %v844
        %v863 = vpop.f32.mrf.mxu0
        %v864 = vadd.f32 0.0, %v863
        %865 = vdwg.mxu0
        %v867 = vsel %vm531, %v810, 0
        %869 = vmatpush.msra.mxu0 0.0
        %870 = vmatpush.msra.mxu0 0.0
        %871 = vmatpush.msra.mxu0 0.0
        %872 = vmatpush.msra.mxu0 0.0
        %873 = vmatpush.msra.mxu0 0.0
        %874 = vmatpush.msra.mxu0 0.0
        %875 = vmatpush.msra.mxu0 0.0
        %876 = vmatpush.msra.mxu0 0.0
        %877 = vmatpush.msra.mxu0 0.0
        %878 = vmatpush.msra.mxu0 0.0
        %879 = vmatpush.msra.mxu0 0.0
        %880 = vmatpush.msra.mxu0 0.0
        %881 = vmatpush.msra.mxu0 0.0
        %882 = vmatpush.msra.mxu0 0.0
        %883 = vmatpush.msra.mxu0 %v817
        %884 = vmatpush.msra.mxu0 %v816
        %885 = vmatmul.f32.gmra.mxu0 %v867
        %v886 = vpop.f32.mrf.mxu0
        %v887 = vadd.f32 0.0, %v886
        %888 = vdwg.mxu0
        %v890 = vsel %vm531, %v811, 0
        %892 = vmatpush.msra.mxu0 0.0
        %893 = vmatpush.msra.mxu0 0.0
        %894 = vmatpush.msra.mxu0 0.0
        %895 = vmatpush.msra.mxu0 0.0
        %896 = vmatpush.msra.mxu0 0.0
        %897 = vmatpush.msra.mxu0 0.0
        %898 = vmatpush.msra.mxu0 0.0
        %899 = vmatpush.msra.mxu0 0.0
        %900 = vmatpush.msra.mxu0 0.0
        %901 = vmatpush.msra.mxu0 0.0
        %902 = vmatpush.msra.mxu0 0.0
        %903 = vmatpush.msra.mxu0 0.0
        %904 = vmatpush.msra.mxu0 0.0
        %905 = vmatpush.msra.mxu0 0.0
        %906 = vmatpush.msra.mxu0 %v819
        %907 = vmatpush.msra.mxu0 %v818
        %908 = vmatmul.f32.gmra.mxu0 %v890
        %v909 = vpop.f32.mrf.mxu0
        %v910 = vadd.f32 0.0, %v909
        %911 = vdwg.mxu0
        %vm912 = vcmask 261120
        %v913 = vsel %vm912, %v841, 0.0
        %v914 = vsel %vm912, %v864, 0.0
        %v915 = vadd.f32 %v913, %v914
        %v916 = vsel %vm912, %v887, 0.0
        %v917 = vadd.f32 %v915, %v916
        %v918 = vsel %vm912, %v910, 0.0
        %v919 = vadd.f32 %v917, %v918
        %v920 = vld [vmem:[%s502] sm:$0x1]
        %v922 = vperm.slane %v920, 0
        %v924 = vadd.f32 %v919, %v922
        %925 = vst.msk [vmem:[%s444] sm:$0xff] %vm912, %v924
        %s926 = sand.u32 %s248, 1
        %s927 = scalar_lea.sflag [#allocation3], %s926
        %s928 = sand.u32 %s248, 1
        %s929 = smul.addr %s928, 8
        %s930 = scalar_lea.vmem [#allocation2], %s929
        // Predicated region
        $region49: #{attention_forward.5} parent=47 // pred_check
          %p931 = pneg %p258
        $region50: #{attention_forward.5} parent=47 // pred_check_branch
          %933 = sbr.rel (%p931) target = $region52
        $region51: #{attention_forward.5} parent=47 // pred_region
          %935 = vsyncadd %s927, 0
          %s936 = sadd.s32 %s28, %s27
          %s937 = sadd.s32 %s936, %s26
          %s938 = smul.addr %s937, 8
          %s939 = scalar_lea.hbm %s7, %s938
          %s941 = sshll.u32 %s930, 4
          %s942 = int_to_ptr.vmem [resolvable:$true] %s941
          %s943 = sshll.u32 %s939, 4
          %s944 = int_to_ptr.hbm [resolvable:$true] %s943
          %946 = dma.vmem_to_hbm [thread:$0]  %s942, 128, %s944, %s927
        $region52: #{attention_forward.5} parent=47 // pred_fallthru
          _
      $region48: #{attention_forward.5} parent=5 // pred_fallthru
        _
      %p947 = scmp.le.s32.totalorder 2, %s16
      // Predicated region
      $region53: #{attention_forward.5} parent=5 // pred_check
        %p948 = pneg %p947
      $region54: #{attention_forward.5} parent=5 // pred_check_branch
        %950 = sbr.rel (%p948) target = $region56
      $region55: #{attention_forward.5} parent=5 // pred_region
        %s951 = ssub.s32 %s16, 2
        // Predicated region
        $region57: #{attention_forward.5} parent=55 // pred_check
          %p952 = pneg %p264
        $region58: #{attention_forward.5} parent=55 // pred_check_branch
          %954 = sbr.rel (%p952) target = $region60
        $region59: #{attention_forward.5} parent=55 // pred_region
          %s955 = sand.u32 %s249, 1
          %s956 = scalar_lea.sflag [#allocation3], %s955
          %s957 = sand.u32 %s249, 1
          %s958 = smul.addr %s957, 8
          %s959 = scalar_lea.vmem [#allocation2], %s958
          %961 = dma.done %s956, 128
        $region60: #{attention_forward.5} parent=55 // pred_fallthru
          _
      $region56: #{attention_forward.5} parent=5 // pred_fallthru
        _
    $region6: #{attention_forward.5} parent=1 // loop_footer
      %s20 = sadd.s32 1, %s16
    $region7: #{attention_forward.5} parent=1 // loop_footer_branch
      %15 = sbr.rel target = $region3
    $region8: #{attention_forward.5} parent=1 // loop_exit
      _
    %962 = vsyncpa [#allocation3], 1
    %s963 = scalar_lea.sflag [#allocation3], 1
    %964 = vsyncpa %s963, 1

</llo_original>
